<compile_context>
chip_gen: v7x
topology: tpu7x:2x2x1
jax: 0.10.0
libtpu: 0.0.40
codegen_flags: <defaults>
</compile_context>

<pallas_src>
import jax
import jax.numpy as jnp
from jax import lax
from jax.experimental import pallas as pl
from jax.experimental.pallas import tpu as pltpu

# ---------------- static config (small SMAC-like shapes) ----------------
BS          = 4                       # episodes (=> 2 batch chunks, exercises the parallel axis)
N_AGENTS    = 3
N_ALLIES    = N_AGENTS - 1            # 2
N_ENEMIES   = 4
OWN_DIM     = 10
ENEMY_DIM   = 8
ALLY_DIM    = 7
RNN_HIDDEN  = 32                      # H
HYPER_DIM   = 16                      # hpn_hyper_dim
N_HEADS     = 2                       # hpn_head_num
OUT_NORMAL  = 6                       # args.output_normal_actions
N_ACTIONS   = OUT_NORMAL + N_ENEMIES  # last-action embedding table size (10)
T_STEPS     = 8                       # time steps unrolled inside one pallas_call

B           = BS * N_AGENTS           # flattened agent-batch (12)
B_PAD       = 8                       # rows per chunk (one sublane group)
NB_CHUNKS   = (B + B_PAD - 1) // B_PAD
BT          = NB_CHUNKS * B_PAD
ALLY_DPAD   = 8                       # ally feature dim padded to enemy dim
N_Q         = OUT_NORMAL + N_ENEMIES  # 10
Q_PAD       = 128                     # lane-dense Q row width

EMB_IN_DIM  = OWN_DIM + N_AGENTS + N_ACTIONS + 1   # 24 (own | onehot id | onehot act | 1)
W_IN_COLS   = ENEMY_DIM * RNN_HIDDEN               # 256
EATT_COLS   = 64                                    # [w_att (32) | b_att (1) | pad]
EH1_COLS    = 3 * HYPER_DIM + 1                     # 49
AH1_COLS    = HYPER_DIM + 1                         # 17
H3          = 3 * RNN_HIDDEN                        # 96
GRU_COLS    = 2 * H3                                # 192
BIAS_COLS   = GRU_COLS + Q_PAD                      # 320

# obs_agent_id = True, obs_last_action = True, hpn_hyper_activation = 'relu'


# ------------------------------ kernel ------------------------------
def hpn_rnn_kernel(
    # per-step streams
    emb_in_ref, enemy_ref, ally_ref,
    # resident (loaded once)
    hin_ref, expand_ref, emb_w_ref, ehyp_w1_ref, ehyp_w2i_ref, ehyp_w2a_ref,
    ahyp_w1_ref, ahyp_w2_ref, gru_w_ref, bias_ref, outn_w_ref,
    # outputs
    q_ref, hh_ref,
):
    f32 = jnp.float32
    H, BP = RNN_HIDDEN, B_PAD
    t = pl.program_id(1)

    # hidden-state carry lives in the revisited hh output block; seed at t == 0
    @pl.when(t == 0)
    def _():
        hh_ref[...] = hin_ref[...]
    h_prev = hh_ref[...]

    # fused own-feature + agent-id + last-action embedding (bias folded as extra row)
    emb = jnp.dot(emb_in_ref[...], emb_w_ref[...], preferred_element_type=f32)        # (8, 32)

    # permutation-invariant contraction: sum_d feat_d * W_gen[:, d*H:(d+1)*H]
    def contract(prod):                                  # (rows, 8*H) -> (rows, H)
        p = prod[:, 0:4 * H] + prod[:, 4 * H:8 * H]
        p = p[:, 0:2 * H] + p[:, 2 * H:4 * H]
        return p[:, 0:H] + p[:, H:2 * H]

    # ----- enemy hypernets: shared first layer; input-W part consumed immediately -----
    e_aug = enemy_ref[...]                                                             # (32, 9)
    e_h1 = jnp.maximum(
        jnp.dot(e_aug, ehyp_w1_ref[...], preferred_element_type=f32), 0.0)             # (32, 49)
    w_in_e = jnp.dot(e_h1, ehyp_w2i_ref[...], preferred_element_type=f32)              # (32, 256)
    e_rep = jnp.dot(e_aug, expand_ref[...], preferred_element_type=f32)                # (32, 256)
    red_e = contract(e_rep * w_in_e)                                                   # (32, 32)

    # ----- ally input hypernet -----
    a_aug = ally_ref[...]                                                              # (16, 9)
    a_h1 = jnp.maximum(
        jnp.dot(a_aug, ahyp_w1_ref[...], preferred_element_type=f32), 0.0)             # (16, 17)
    w_in_a = jnp.dot(a_h1, ahyp_w2_ref[...], preferred_element_type=f32)               # (16, 256)
    a_rep = jnp.dot(a_aug, expand_ref[...], preferred_element_type=f32)                # (16, 256)
    red_a = contract(a_rep * w_in_a)                                                   # (16, 32)

    merged = (red_e[0:BP] + red_e[BP:2 * BP] + red_e[2 * BP:3 * BP] + red_e[3 * BP:4 * BP]
              + red_a[0:BP] + red_a[BP:2 * BP])                                        # (8, 32)
    x = jnp.maximum(emb + merged, 0.0)

    # ----- fused GRUCell: one matmul on [x | h_prev] against blockdiag(Wih, Whh) -----
    xh = jnp.concatenate([x, h_prev], axis=1)                                          # (8, 64)
    g = jnp.dot(xh, gru_w_ref[...], preferred_element_type=f32) + bias_ref[:, 0:GRU_COLS]
    r = jax.nn.sigmoid(g[:, 0:H] + g[:, H3:H3 + H])
    z = jax.nn.sigmoid(g[:, H:2 * H] + g[:, H3 + H:H3 + 2 * H])
    n = jnp.tanh(g[:, 2 * H:3 * H] + r * g[:, H3 + 2 * H:H3 + 3 * H])
    hh = (1.0 - z) * n + z * h_prev
    hh_ref[...] = hh

    # ----- Q epilogue: lane-dense (8, 128) row; output-head merger pre-folded -----
    q = jnp.dot(hh, outn_w_ref[...], preferred_element_type=f32) \
        + bias_ref[:, GRU_COLS:BIAS_COLS]                                              # (8, 128)
    e_att = jnp.dot(e_h1, ehyp_w2a_ref[...], preferred_element_type=f32)               # (32, 64)
    w_att = e_att[:, 0:H]                                                              # (32, 32)
    b_att = e_att[:, H:H + 1]                                                          # (32, 1)
    hh_t = jnp.concatenate([hh] * N_ENEMIES, axis=0)                                   # (32, 32)
    qa = jnp.sum(hh_t * w_att, axis=1, keepdims=True) + b_att                          # (32, 1)
    lane = lax.broadcasted_iota(jnp.int32, (BP, Q_PAD), 1)
    for e in range(N_ENEMIES):
        q = q + jnp.where(lane == OUT_NORMAL + e, qa[e * BP:(e + 1) * BP, :], 0.0)
    q_ref[...] = q


# -------------------- parameter packing (once per weight update) --------------------
def prepare_params(p):
    f32 = jnp.float32
    H, heads, HD = RNN_HIDDEN, N_HEADS, HYPER_DIM

    # fold input-head Merger softmax into input-hypernet 2nd layers (HH -> H)
    sm_in = jax.nn.softmax(p['mrg_in'][0], axis=0)                                   # (heads, H)
    he_w2_f = jnp.einsum('idkh,kh->idh',
                         p['he_w2'].reshape(HD, ENEMY_DIM, heads, H), sm_in
                         ).reshape(HD, ENEMY_DIM * H)
    he_b2_f = jnp.einsum('dkh,kh->dh',
                         p['he_b2'].reshape(ENEMY_DIM, heads, H), sm_in
                         ).reshape(ENEMY_DIM * H)
    ha_w2_f = jnp.einsum('idkh,kh->idh',
                         p['ha_w2'].reshape(HD, ALLY_DIM, heads, H), sm_in
                         ).reshape(HD, ALLY_DIM * H)
    ha_b2_f = jnp.einsum('dkh,kh->dh',
                         p['ha_b2'].reshape(ALLY_DIM, heads, H), sm_in
                         ).reshape(ALLY_DIM * H)

    # fold output-head Merger softmax into attack hypernet 2nd layers
    osm = jax.nn.softmax(p['mrg_out'][0, :, 0])                                      # (heads,)
    ow_w2_eff = jnp.einsum('ihk,k->ih', p['ow_w2'].reshape(HD, H, heads), osm)       # (HD, H)
    ow_b2_eff = jnp.einsum('hk,k->h', p['ow_b2'].reshape(H, heads), osm)             # (H,)
    ob_w2_eff = p['ob_w2'] @ osm                                                     # (HD,)
    ob_b2_eff = p['ob_b2'] @ osm                                                     # scalar

    # fused embedding matmul: [fc1_w; agent_emb; act_emb; fc1_b]
    emb_w = jnp.concatenate(
        [p['fc1_w'], p['agent_emb'], p['act_emb'], p['fc1_b'][None, :]], axis=0).astype(f32)

    # enemy hypernets (input-W / attack-W / attack-b) share one first-layer slab;
    # biases folded via the aug ones-column and a const-1 hidden column.
    eh1 = jnp.zeros((ENEMY_DIM + 1, EH1_COLS), f32)
    eh1 = eh1.at[:ENEMY_DIM, 0:HD].set(p['he_w1'])
    eh1 = eh1.at[:ENEMY_DIM, HD:2 * HD].set(p['ow_w1'])
    eh1 = eh1.at[:ENEMY_DIM, 2 * HD:3 * HD].set(p['ob_w1'])
    eh1 = eh1.at[ENEMY_DIM, 0:HD].set(p['he_b1'])
    eh1 = eh1.at[ENEMY_DIM, HD:2 * HD].set(p['ow_b1'])
    eh1 = eh1.at[ENEMY_DIM, 2 * HD:3 * HD].set(p['ob_b1'])
    eh1 = eh1.at[ENEMY_DIM, 3 * HD].set(1.0)                    # const-1 hidden column

    eh2_in = jnp.zeros((EH1_COLS, W_IN_COLS), f32)              # input-weight part (256 cols)
    eh2_in = eh2_in.at[0:HD, :].set(he_w2_f)
    eh2_in = eh2_in.at[3 * HD, :].set(he_b2_f)

    eh2_att = jnp.zeros((EH1_COLS, EATT_COLS), f32)             # [w_att | b_att] part (64 cols)
    eh2_att = eh2_att.at[HD:2 * HD, 0:H].set(ow_w2_eff)
    eh2_att = eh2_att.at[2 * HD:3 * HD, H].set(ob_w2_eff)
    eh2_att = eh2_att.at[3 * HD, 0:H].set(ow_b2_eff)
    eh2_att = eh2_att.at[3 * HD, H].set(ob_b2_eff)

    ah1 = jnp.zeros((ALLY_DPAD + 1, AH1_COLS), f32)             # row 7 (pad feature) stays zero
    ah1 = ah1.at[:ALLY_DIM, 0:HD].set(p['ha_w1'])
    ah1 = ah1.at[ALLY_DPAD, 0:HD].set(p['ha_b1'])
    ah1 = ah1.at[ALLY_DPAD, HD].set(1.0)

    ah2 = jnp.zeros((AH1_COLS, W_IN_COLS), f32)
    ah2 = ah2.at[0:HD, 0:ALLY_DIM * H].set(ha_w2_f)
    ah2 = ah2.at[HD, 0:ALLY_DIM * H].set(ha_b2_f)

    # fused GRU weight: [x | h] @ [[Wih, 0], [0, Whh]]
    gru_w = jnp.zeros((2 * H, GRU_COLS), f32)
    gru_w = gru_w.at[0:H, 0:H3].set(p['gru_wih'].T)
    gru_w = gru_w.at[H:2 * H, H3:2 * H3].set(p['gru_whh'].T)

    # packed bias slab: [bih | bhh | outn_b (lane-dense)]
    bias = jnp.zeros((1, BIAS_COLS), f32)
    bias = bias.at[0, 0:H3].set(p['gru_bih'])
    bias = bias.at[0, H3:2 * H3].set(p['gru_bhh'])
    bias = bias.at[0, GRU_COLS:GRU_COLS + OUT_NORMAL].set(p['outn_b'])

    # normal-action head padded to a lane-dense 128-wide row (lanes >= OUT_NORMAL zero)
    outn_w = jnp.zeros((H, Q_PAD), f32).at[:, :OUT_NORMAL].set(p['outn_w'])

    # 0/1 expansion matrix: rep[:, d*H + j] = feat_d  (row 8 zero: ones column ignored)
    expand = jnp.zeros((ENEMY_DIM + 1, W_IN_COLS), f32)
    for d in range(ENEMY_DIM):
        expand = expand.at[d, d * H:(d + 1) * H].set(1.0)

    return dict(expand=expand, emb_w=emb_w, ehyp_w1=eh1, ehyp_w2_in=eh2_in,
                ehyp_w2_att=eh2_att, ahyp_w1=ah1, ahyp_w2=ah2,
                gru_w=gru_w, bias=bias, outn_w=outn_w)


# ------------------------------ wrapper ------------------------------
def hpn_rnn_forward(pp, own_seq, enemy_seq, ally_seq, agent_ids, act_ids_seq, hidden):
    """Run T sequential applications of the module forward inside ONE pallas_call.

    own_seq   (T, B, OWN_DIM)           enemy_seq (T, B, NE, ENEMY_DIM)
    ally_seq  (T, B, NA, ALLY_DIM)      agent_ids (B,) int32
    act_ids_seq (T, B) int32            hidden    (BS, N_AGENTS, H) initial state
    returns q (T, BS, N_AGENTS, N_Q), final hh (BS, N_AGENTS, H)
    """
    f32 = jnp.float32
    H = RNN_HIDDEN
    T = own_seq.shape[0]
    pad_b = BT - B

    # per-step streams, chunk-major: row-block index = chunk * T + t
    oh_agent = jax.nn.one_hot(agent_ids, N_AGENTS, dtype=f32)                       # (B, 3)
    oh_act = jax.nn.one_hot(act_ids_seq, N_ACTIONS, dtype=f32)                      # (T, B, 10)
    emb_in = jnp.concatenate(
        [own_seq.astype(f32),
         jnp.broadcast_to(oh_agent[None], (T, B, N_AGENTS)),
         oh_act, jnp.ones((T, B, 1), f32)], axis=2)                                 # (T, B, 24)
    emb_in = jnp.pad(emb_in, ((0, 0), (0, pad_b), (0, 0)))
    emb_in = emb_in.reshape(T, NB_CHUNKS, B_PAD, EMB_IN_DIM).transpose(1, 0, 2, 3)
    emb_in = emb_in.reshape(NB_CHUNKS * T * B_PAD, EMB_IN_DIM)

    en = jnp.pad(enemy_seq.astype(f32), ((0, 0), (0, pad_b), (0, 0), (0, 0)))        # (T, BT, NE, 8)
    en = en.reshape(T, NB_CHUNKS, B_PAD, N_ENEMIES, ENEMY_DIM).transpose(1, 0, 3, 2, 4)
    en = jnp.concatenate([en, jnp.ones(en.shape[:-1] + (1,), f32)], axis=-1)         # ones column
    en = en.reshape(NB_CHUNKS * T * N_ENEMIES * B_PAD, ENEMY_DIM + 1)

    al = jnp.pad(ally_seq.astype(f32),
                 ((0, 0), (0, pad_b), (0, 0), (0, ALLY_DPAD - ALLY_DIM)))            # (T, BT, NA, 8)
    al = al.reshape(T, NB_CHUNKS, B_PAD, N_ALLIES, ALLY_DPAD).transpose(1, 0, 3, 2, 4)
    al = jnp.concatenate([al, jnp.ones(al.shape[:-1] + (1,), f32)], axis=-1)
    al = al.reshape(NB_CHUNKS * T * N_ALLIES * B_PAD, ALLY_DPAD + 1)

    hin = jnp.pad(hidden.reshape(B, H).astype(f32), ((0, pad_b), (0, 0)))            # (BT, 32)

    def stream(rows, cols):
        return pl.BlockSpec((rows, cols), lambda c, t: (c * T + t, 0))

    def resident(arr):
        return pl.BlockSpec(arr.shape, lambda c, t: (0, 0))     # fetched once, stays in VMEM

    weights = [pp['expand'], pp['emb_w'], pp['ehyp_w1'], pp['ehyp_w2_in'], pp['ehyp_w2_att'],
               pp['ahyp_w1'], pp['ahyp_w2'], pp['gru_w'], pp['bias'], pp['outn_w']]

    in_specs = [
        stream(B_PAD, EMB_IN_DIM),
        stream(N_ENEMIES * B_PAD, ENEMY_DIM + 1),
        stream(N_ALLIES * B_PAD, ALLY_DPAD + 1),
        pl.BlockSpec((B_PAD, H), lambda c, t: (c, 0)),           # initial hidden (per chunk)
    ] + [resident(w) for w in weights]

    q_flat, hh_flat = pl.pallas_call(
        hpn_rnn_kernel,
        grid=(NB_CHUNKS, T),
        out_shape=(
            jax.ShapeDtypeStruct((NB_CHUNKS * T * B_PAD, Q_PAD), jnp.float32),
            jax.ShapeDtypeStruct((NB_CHUNKS * B_PAD, H), jnp.float32),
        ),
        in_specs=in_specs,
        out_specs=(
            pl.BlockSpec((B_PAD, Q_PAD), lambda c, t: (c * T + t, 0)),   # lane-dense q per step
            pl.BlockSpec((B_PAD, H), lambda c, t: (c, 0)),               # hh carry / final state
        ),
        compiler_params=pltpu.CompilerParams(
            dimension_semantics=("parallel", "arbitrary")),
    )(emb_in, en, al, hin, *weights)

    q = q_flat.reshape(NB_CHUNKS, T, B_PAD, Q_PAD).transpose(1, 0, 2, 3)
    q = q.reshape(T, BT, Q_PAD)[:, :B, :N_Q].reshape(T, BS, N_AGENTS, N_Q)
    hh = hh_flat[:B].reshape(BS, N_AGENTS, H)
    return q, hh


# ------------------------------ pure-JAX reference (one module step) ------------------------------
def reference_step(p, own, enemy, ally, agent_ids, act_ids, h_in):
    H, heads = RNN_HIDDEN, N_HEADS
    HH = H * heads
    emb = own @ p['fc1_w'] + p['fc1_b']
    emb = emb + p['agent_emb'][agent_ids] + p['act_emb'][act_ids]

    h1 = jax.nn.relu(enemy @ p['he_w1'] + p['he_b1'])
    w = (h1 @ p['he_w2'] + p['he_b2']).reshape(B * N_ENEMIES, ENEMY_DIM, HH)
    emb_e = jnp.einsum('nd,ndk->nk', enemy, w).reshape(B, N_ENEMIES, heads, H).sum(1)
    h1a = jax.nn.relu(ally @ p['ha_w1'] + p['ha_b1'])
    wa = (h1a @ p['ha_w2'] + p['ha_b2']).reshape(B * N_ALLIES, ALLY_DIM, HH)
    emb_a = jnp.einsum('nd,ndk->nk', ally, wa).reshape(B, N_ALLIES, heads, H).sum(1)

    sm = jax.nn.softmax(p['mrg_in'], axis=1)
    merged = (sm * (emb_e + emb_a)).sum(1)
    x = jax.nn.relu(emb + merged)

    gi = x @ p['gru_wih'].T + p['gru_bih']
    gh = h_in @ p['gru_whh'].T + p['gru_bhh']
    r = jax.nn.sigmoid(gi[:, :H] + gh[:, :H])
    z = jax.nn.sigmoid(gi[:, H:2 * H] + gh[:, H:2 * H])
    n = jnp.tanh(gi[:, 2 * H:] + r * gh[:, 2 * H:])
    hh = (1 - z) * n + z * h_in

    q_normal = hh @ p['outn_w'] + p['outn_b']

    hw = jax.nn.relu(enemy @ p['ow_w1'] + p['ow_b1'])
    w_att = (hw @ p['ow_w2'] + p['ow_b2']).reshape(B, N_ENEMIES, H, heads)
    w_att = jnp.transpose(w_att, (0, 2, 1, 3)).reshape(B, H, N_ENEMIES * heads)
    hb = jax.nn.relu(enemy @ p['ob_w1'] + p['ob_b1'])
    b_att = (hb @ p['ob_w2'] + p['ob_b2']).reshape(B, N_ENEMIES * heads)
    q_att = (jnp.einsum('bh,bhk->bk', hh, w_att) + b_att).reshape(B * N_ENEMIES, heads, 1)
    osm = jax.nn.softmax(p['mrg_out'], axis=1)
    q_attack = (osm * q_att).sum(1).reshape(B, N_ENEMIES)

    q = jnp.concatenate([q_normal, q_attack], axis=-1)
    return q, hh


# ------------------------------ main ------------------------------
if __name__ == "__main__":
    key = jax.random.PRNGKey(0)
    keys = list(jax.random.split(key, 64))
    _k = iter(keys)

    def rnd(*shape, scale=0.3):
        return jax.random.normal(next(_k), shape, jnp.float32) * scale

    H, heads = RNN_HIDDEN, N_HEADS
    HH = H * heads
    params = dict(
        agent_emb=rnd(N_AGENTS, H),
        act_emb=rnd(N_ACTIONS, H),
        fc1_w=rnd(OWN_DIM, H), fc1_b=rnd(H),
        he_w1=rnd(ENEMY_DIM, HYPER_DIM), he_b1=rnd(HYPER_DIM),
        he_w2=rnd(HYPER_DIM, ENEMY_DIM * HH), he_b2=rnd(ENEMY_DIM * HH),
        ha_w1=rnd(ALLY_DIM, HYPER_DIM), ha_b1=rnd(HYPER_DIM),
        ha_w2=rnd(HYPER_DIM, ALLY_DIM * HH), ha_b2=rnd(ALLY_DIM * HH),
        mrg_in=rnd(1, heads, H),
        gru_wih=rnd(3 * H, H), gru_bih=rnd(3 * H),
        gru_whh=rnd(3 * H, H), gru_bhh=rnd(3 * H),
        outn_w=rnd(H, OUT_NORMAL), outn_b=rnd(OUT_NORMAL),
        ow_w1=rnd(ENEMY_DIM, HYPER_DIM), ow_b1=rnd(HYPER_DIM),
        ow_w2=rnd(HYPER_DIM, H * heads), ow_b2=rnd(H * heads),
        ob_w1=rnd(ENEMY_DIM, HYPER_DIM), ob_b1=rnd(HYPER_DIM),
        ob_w2=rnd(HYPER_DIM, heads), ob_b2=rnd(heads),
        mrg_out=rnd(1, heads, 1),
    )

    T = T_STEPS
    own_seq = rnd(T, B, OWN_DIM, scale=1.0)
    enemy_seq = rnd(T, B, N_ENEMIES, ENEMY_DIM, scale=1.0)
    ally_seq = rnd(T, B, N_ALLIES, ALLY_DIM, scale=1.0)
    agent_ids = jnp.tile(jnp.arange(N_AGENTS, dtype=jnp.int32), (BS,))               # (B,)
    act_ids_seq = jax.random.randint(next(_k), (T, B), 0, N_ACTIONS, jnp.int32)      # (T, B)
    hidden0 = rnd(BS, N_AGENTS, H, scale=0.5)

    packed = prepare_params(params)           # once per weight update
    q, hh = hpn_rnn_forward(packed, own_seq, enemy_seq, ally_seq,
                            agent_ids, act_ids_seq, hidden0)
    jax.block_until_ready((q, hh))

    # reference: apply the single-step module forward T times, carrying the hidden state
    h = hidden0.reshape(B, H)
    q_steps = []
    for t in range(T):
        q_t, h = reference_step(params, own_seq[t],
                                enemy_seq[t].reshape(B * N_ENEMIES, ENEMY_DIM),
                                ally_seq[t].reshape(B * N_ALLIES, ALLY_DIM),
                                agent_ids, act_ids_seq[t], h)
        q_steps.append(q_t)
    q_ref = jnp.stack(q_steps).reshape(T, BS, N_AGENTS, N_Q)
    hh_ref = h.reshape(BS, N_AGENTS, H)

    assert q.shape == (T, BS, N_AGENTS, N_Q) and hh.shape == (BS, N_AGENTS, H)
    err_q = float(jnp.max(jnp.abs(q - q_ref)))
    err_h = float(jnp.max(jnp.abs(hh - hh_ref)))
    assert err_q < 2e-3, err_q
    assert err_h < 2e-3, err_h
    print("KERNEL_OK")
</pallas_src>

<mosaic_0001>
module attributes {stable_mosaic.version = 11 : i64} {
  func.func @hpn_rnn_kernel(%arg0: i32, %arg1: i32, %arg2: memref<8x24xf32, #tpu.memory_space<vmem>>, %arg3: memref<32x9xf32, #tpu.memory_space<vmem>>, %arg4: memref<16x9xf32, #tpu.memory_space<vmem>>, %arg5: memref<8x32xf32, #tpu.memory_space<vmem>>, %arg6: memref<9x256xf32, #tpu.memory_space<vmem>>, %arg7: memref<24x32xf32, #tpu.memory_space<vmem>>, %arg8: memref<9x49xf32, #tpu.memory_space<vmem>>, %arg9: memref<49x256xf32, #tpu.memory_space<vmem>>, %arg10: memref<49x64xf32, #tpu.memory_space<vmem>>, %arg11: memref<9x17xf32, #tpu.memory_space<vmem>>, %arg12: memref<17x256xf32, #tpu.memory_space<vmem>>, %arg13: memref<64x192xf32, #tpu.memory_space<vmem>>, %arg14: memref<1x320xf32, #tpu.memory_space<vmem>>, %arg15: memref<32x128xf32, #tpu.memory_space<vmem>>, %arg16: memref<8x128xf32, #tpu.memory_space<vmem>>, %arg17: memref<8x32xf32, #tpu.memory_space<vmem>>) attributes {dimension_semantics = [#tpu.dimension_semantics<parallel>, #tpu.dimension_semantics<arbitrary>], iteration_bounds = array<i64: 2, 8>, scalar_prefetch = 0 : i64, scratch_operands = 0 : i64, tpu.core_type = #tpu.core_type<tc>, window_params = [{transform_indices = @transform_0, window_bounds = array<i64: 8, 24>}, {transform_indices = @transform_1, window_bounds = array<i64: 32, 9>}, {transform_indices = @transform_2, window_bounds = array<i64: 16, 9>}, {transform_indices = @transform_3, window_bounds = array<i64: 8, 32>}, {pipeline_mode = #tpu.pipeline_mode<synchronous>, transform_indices = @transform_4, window_bounds = array<i64: 9, 256>}, {pipeline_mode = #tpu.pipeline_mode<synchronous>, transform_indices = @transform_5, window_bounds = array<i64: 24, 32>}, {pipeline_mode = #tpu.pipeline_mode<synchronous>, transform_indices = @transform_6, window_bounds = array<i64: 9, 49>}, {pipeline_mode = #tpu.pipeline_mode<synchronous>, transform_indices = @transform_7, window_bounds = array<i64: 49, 256>}, {pipeline_mode = #tpu.pipeline_mode<synchronous>, transform_indices = @transform_8, window_bounds = array<i64: 49, 64>}, {pipeline_mode = #tpu.pipeline_mode<synchronous>, transform_indices = @transform_9, window_bounds = array<i64: 9, 17>}, {pipeline_mode = #tpu.pipeline_mode<synchronous>, transform_indices = @transform_10, window_bounds = array<i64: 17, 256>}, {pipeline_mode = #tpu.pipeline_mode<synchronous>, transform_indices = @transform_11, window_bounds = array<i64: 64, 192>}, {pipeline_mode = #tpu.pipeline_mode<synchronous>, transform_indices = @transform_12, window_bounds = array<i64: 1, 320>}, {pipeline_mode = #tpu.pipeline_mode<synchronous>, transform_indices = @transform_13, window_bounds = array<i64: 32, 128>}, {transform_indices = @transform_14, window_bounds = array<i64: 8, 128>}, {transform_indices = @transform_15, window_bounds = array<i64: 8, 32>}]} {
    %c0_i32 = arith.constant 0 : i32
    %0 = arith.cmpi eq, %arg1, %c0_i32 : i32
    %1 = arith.extui %0 : i1 to i32
    %c0_i32_0 = arith.constant 0 : i32
    %2 = arith.cmpi ne, %1, %c0_i32_0 : i32
    scf.if %2 {
      %c0_55 = arith.constant 0 : index
      %c0_56 = arith.constant 0 : index
      %140 = vector.load %arg5[%c0_55, %c0_56] : memref<8x32xf32, #tpu.memory_space<vmem>>, vector<8x32xf32>
      %c0_57 = arith.constant 0 : index
      %c0_58 = arith.constant 0 : index
      %141 = vector.load %arg17[%c0_57, %c0_58] : memref<8x32xf32, #tpu.memory_space<vmem>>, vector<8x32xf32>
      tpu.vector_store %arg17[%c0_57, %c0_58], %140 {strides = array<i32>} : memref<8x32xf32, #tpu.memory_space<vmem>>, vector<8x32xf32>,
    } else {
    }
    %c0 = arith.constant 0 : index
    %c0_1 = arith.constant 0 : index
    %3 = vector.load %arg17[%c0, %c0_1] : memref<8x32xf32, #tpu.memory_space<vmem>>, vector<8x32xf32>
    %c0_2 = arith.constant 0 : index
    %c0_3 = arith.constant 0 : index
    %4 = vector.load %arg2[%c0_2, %c0_3] : memref<8x24xf32, #tpu.memory_space<vmem>>, vector<8x24xf32>
    %c0_4 = arith.constant 0 : index
    %c0_5 = arith.constant 0 : index
    %5 = vector.load %arg7[%c0_4, %c0_5] : memref<24x32xf32, #tpu.memory_space<vmem>>, vector<24x32xf32>
    %cst = arith.constant dense<0.000000e+00> : vector<8x32xf32>
    %6 = tpu.matmul %4, %5, %cst {dimension_numbers = #tpu.dot_dimension_numbers<[1], [0], [0], [1], [0, 0, 1, 1], [], []>} : vector<8x24xf32>, vector<24x32xf32>, vector<8x32xf32> -> vector<8x32xf32>
    %c0_6 = arith.constant 0 : index
    %c0_7 = arith.constant 0 : index
    %7 = vector.load %arg3[%c0_6, %c0_7] : memref<32x9xf32, #tpu.memory_space<vmem>>, vector<32x9xf32>
    %c0_8 = arith.constant 0 : index
    %c0_9 = arith.constant 0 : index
    %8 = vector.load %arg8[%c0_8, %c0_9] : memref<9x49xf32, #tpu.memory_space<vmem>>, vector<9x49xf32>
    %cst_10 = arith.constant dense<0.000000e+00> : vector<32x49xf32>
    %9 = tpu.matmul %7, %8, %cst_10 {dimension_numbers = #tpu.dot_dimension_numbers<[1], [0], [0], [1], [0, 0, 1, 1], [], []>} : vector<32x9xf32>, vector<9x49xf32>, vector<32x49xf32> -> vector<32x49xf32>
    %cst_11 = arith.constant 0.000000e+00 : f32
    %10 = vector.broadcast %cst_11 : f32 to vector<32x49xf32>
    %11 = arith.maximumf %9, %10 : vector<32x49xf32>
    %c0_12 = arith.constant 0 : index
    %c0_13 = arith.constant 0 : index
    %12 = vector.load %arg9[%c0_12, %c0_13] : memref<49x256xf32, #tpu.memory_space<vmem>>, vector<49x256xf32>
    %cst_14 = arith.constant dense<0.000000e+00> : vector<32x256xf32>
    %13 = tpu.matmul %11, %12, %cst_14 {dimension_numbers = #tpu.dot_dimension_numbers<[1], [0], [0], [1], [0, 0, 1, 1], [], []>} : vector<32x49xf32>, vector<49x256xf32>, vector<32x256xf32> -> vector<32x256xf32>
    %c0_15 = arith.constant 0 : index
    %c0_16 = arith.constant 0 : index
    %14 = vector.load %arg6[%c0_15, %c0_16] : memref<9x256xf32, #tpu.memory_space<vmem>>, vector<9x256xf32>
    %cst_17 = arith.constant dense<0.000000e+00> : vector<32x256xf32>
    %15 = tpu.matmul %7, %14, %cst_17 {dimension_numbers = #tpu.dot_dimension_numbers<[1], [0], [0], [1], [0, 0, 1, 1], [], []>} : vector<32x9xf32>, vector<9x256xf32>, vector<32x256xf32> -> vector<32x256xf32>
    %16 = arith.mulf %15, %13 : vector<32x256xf32>
    %17 = vector.extract_strided_slice %16 {offsets = [0, 0], sizes = [32, 128], strides = [1, 1]} : vector<32x256xf32> to vector<32x128xf32>
    %18 = vector.extract_strided_slice %16 {offsets = [0, 128], sizes = [32, 128], strides = [1, 1]} : vector<32x256xf32> to vector<32x128xf32>
    %19 = arith.addf %17, %18 : vector<32x128xf32>
    %20 = vector.extract_strided_slice %19 {offsets = [0, 0], sizes = [32, 64], strides = [1, 1]} : vector<32x128xf32> to vector<32x64xf32>
    %21 = vector.extract_strided_slice %19 {offsets = [0, 64], sizes = [32, 64], strides = [1, 1]} : vector<32x128xf32> to vector<32x64xf32>
    %22 = arith.addf %20, %21 : vector<32x64xf32>
    %23 = vector.extract_strided_slice %22 {offsets = [0, 0], sizes = [32, 32], strides = [1, 1]} : vector<32x64xf32> to vector<32x32xf32>
    %24 = vector.extract_strided_slice %22 {offsets = [0, 32], sizes = [32, 32], strides = [1, 1]} : vector<32x64xf32> to vector<32x32xf32>
    %25 = arith.addf %23, %24 : vector<32x32xf32>
    %c0_18 = arith.constant 0 : index
    %c0_19 = arith.constant 0 : index
    %26 = vector.load %arg4[%c0_18, %c0_19] : memref<16x9xf32, #tpu.memory_space<vmem>>, vector<16x9xf32>
    %c0_20 = arith.constant 0 : index
    %c0_21 = arith.constant 0 : index
    %27 = vector.load %arg11[%c0_20, %c0_21] : memref<9x17xf32, #tpu.memory_space<vmem>>, vector<9x17xf32>
    %cst_22 = arith.constant dense<0.000000e+00> : vector<16x17xf32>
    %28 = tpu.matmul %26, %27, %cst_22 {dimension_numbers = #tpu.dot_dimension_numbers<[1], [0], [0], [1], [0, 0, 1, 1], [], []>} : vector<16x9xf32>, vector<9x17xf32>, vector<16x17xf32> -> vector<16x17xf32>
    %cst_23 = arith.constant 0.000000e+00 : f32
    %29 = vector.broadcast %cst_23 : f32 to vector<16x17xf32>
    %30 = arith.maximumf %28, %29 : vector<16x17xf32>
    %c0_24 = arith.constant 0 : index
    %c0_25 = arith.constant 0 : index
    %31 = vector.load %arg12[%c0_24, %c0_25] : memref<17x256xf32, #tpu.memory_space<vmem>>, vector<17x256xf32>
    %cst_26 = arith.constant dense<0.000000e+00> : vector<16x256xf32>
    %32 = tpu.matmul %30, %31, %cst_26 {dimension_numbers = #tpu.dot_dimension_numbers<[1], [0], [0], [1], [0, 0, 1, 1], [], []>} : vector<16x17xf32>, vector<17x256xf32>, vector<16x256xf32> -> vector<16x256xf32>
    %c0_27 = arith.constant 0 : index
    %c0_28 = arith.constant 0 : index
    %33 = vector.load %arg6[%c0_27, %c0_28] : memref<9x256xf32, #tpu.memory_space<vmem>>, vector<9x256xf32>
    %cst_29 = arith.constant dense<0.000000e+00> : vector<16x256xf32>
    %34 = tpu.matmul %26, %33, %cst_29 {dimension_numbers = #tpu.dot_dimension_numbers<[1], [0], [0], [1], [0, 0, 1, 1], [], []>} : vector<16x9xf32>, vector<9x256xf32>, vector<16x256xf32> -> vector<16x256xf32>
    %35 = arith.mulf %34, %32 : vector<16x256xf32>
    %36 = vector.extract_strided_slice %35 {offsets = [0, 0], sizes = [16, 128], strides = [1, 1]} : vector<16x256xf32> to vector<16x128xf32>
    %37 = vector.extract_strided_slice %35 {offsets = [0, 128], sizes = [16, 128], strides = [1, 1]} : vector<16x256xf32> to vector<16x128xf32>
    %38 = arith.addf %36, %37 : vector<16x128xf32>
    %39 = vector.extract_strided_slice %38 {offsets = [0, 0], sizes = [16, 64], strides = [1, 1]} : vector<16x128xf32> to vector<16x64xf32>
    %40 = vector.extract_strided_slice %38 {offsets = [0, 64], sizes = [16, 64], strides = [1, 1]} : vector<16x128xf32> to vector<16x64xf32>
    %41 = arith.addf %39, %40 : vector<16x64xf32>
    %42 = vector.extract_strided_slice %41 {offsets = [0, 0], sizes = [16, 32], strides = [1, 1]} : vector<16x64xf32> to vector<16x32xf32>
    %43 = vector.extract_strided_slice %41 {offsets = [0, 32], sizes = [16, 32], strides = [1, 1]} : vector<16x64xf32> to vector<16x32xf32>
    %44 = arith.addf %42, %43 : vector<16x32xf32>
    %45 = vector.extract_strided_slice %25 {offsets = [0, 0], sizes = [8, 32], strides = [1, 1]} : vector<32x32xf32> to vector<8x32xf32>
    %46 = vector.extract_strided_slice %25 {offsets = [8, 0], sizes = [8, 32], strides = [1, 1]} : vector<32x32xf32> to vector<8x32xf32>
    %47 = arith.addf %45, %46 : vector<8x32xf32>
    %48 = vector.extract_strided_slice %25 {offsets = [16, 0], sizes = [8, 32], strides = [1, 1]} : vector<32x32xf32> to vector<8x32xf32>
    %49 = arith.addf %47, %48 : vector<8x32xf32>
    %50 = vector.extract_strided_slice %25 {offsets = [24, 0], sizes = [8, 32], strides = [1, 1]} : vector<32x32xf32> to vector<8x32xf32>
    %51 = arith.addf %49, %50 : vector<8x32xf32>
    %52 = vector.extract_strided_slice %44 {offsets = [0, 0], sizes = [8, 32], strides = [1, 1]} : vector<16x32xf32> to vector<8x32xf32>
    %53 = arith.addf %51, %52 : vector<8x32xf32>
    %54 = vector.extract_strided_slice %44 {offsets = [8, 0], sizes = [8, 32], strides = [1, 1]} : vector<16x32xf32> to vector<8x32xf32>
    %55 = arith.addf %53, %54 : vector<8x32xf32>
    %56 = arith.addf %6, %55 : vector<8x32xf32>
    %cst_30 = arith.constant 0.000000e+00 : f32
    %57 = vector.broadcast %cst_30 : f32 to vector<8x32xf32>
    %58 = arith.maximumf %56, %57 : vector<8x32xf32>
    %59 = tpu.concatenate %58, %3 in 1 : vector<8x32xf32>, vector<8x32xf32> -> vector<8x64xf32>
    %c0_31 = arith.constant 0 : index
    %c0_32 = arith.constant 0 : index
    %60 = vector.load %arg13[%c0_31, %c0_32] : memref<64x192xf32, #tpu.memory_space<vmem>>, vector<64x192xf32>
    %cst_33 = arith.constant dense<0.000000e+00> : vector<8x192xf32>
    %61 = tpu.matmul %59, %60, %cst_33 {dimension_numbers = #tpu.dot_dimension_numbers<[1], [0], [0], [1], [0, 0, 1, 1], [], []>} : vector<8x64xf32>, vector<64x192xf32>, vector<8x192xf32> -> vector<8x192xf32>
    %c0_34 = arith.constant 0 : index
    %c0_35 = arith.constant 0 : index
    %62 = vector.load %arg14[%c0_34, %c0_35] : memref<1x320xf32, #tpu.memory_space<vmem>>, vector<1x192xf32>
    %63 = vector.broadcast %62 : vector<1x192xf32> to vector<8x192xf32>
    %64 = arith.addf %61, %63 : vector<8x192xf32>
    %65 = vector.extract_strided_slice %64 {offsets = [0, 0], sizes = [8, 32], strides = [1, 1]} : vector<8x192xf32> to vector<8x32xf32>
    %66 = vector.extract_strided_slice %64 {offsets = [0, 96], sizes = [8, 32], strides = [1, 1]} : vector<8x192xf32> to vector<8x32xf32>
    %67 = arith.addf %65, %66 : vector<8x32xf32>
    %68 = arith.negf %67 : vector<8x32xf32>
    %69 = math.exp %68 : vector<8x32xf32>
    %cst_36 = arith.constant 1.000000e+00 : f32
    %70 = vector.broadcast %cst_36 : f32 to vector<8x32xf32>
    %71 = arith.addf %70, %69 : vector<8x32xf32>
    %72 = arith.divf %70, %71 : vector<8x32xf32>
    %73 = vector.extract_strided_slice %64 {offsets = [0, 32], sizes = [8, 32], strides = [1, 1]} : vector<8x192xf32> to vector<8x32xf32>
    %74 = vector.extract_strided_slice %64 {offsets = [0, 128], sizes = [8, 32], strides = [1, 1]} : vector<8x192xf32> to vector<8x32xf32>
    %75 = arith.addf %73, %74 : vector<8x32xf32>
    %76 = arith.negf %75 : vector<8x32xf32>
    %77 = math.exp %76 : vector<8x32xf32>
    %cst_37 = arith.constant 1.000000e+00 : f32
    %78 = vector.broadcast %cst_37 : f32 to vector<8x32xf32>
    %79 = arith.addf %78, %77 : vector<8x32xf32>
    %80 = arith.divf %78, %79 : vector<8x32xf32>
    %81 = vector.extract_strided_slice %64 {offsets = [0, 64], sizes = [8, 32], strides = [1, 1]} : vector<8x192xf32> to vector<8x32xf32>
    %82 = vector.extract_strided_slice %64 {offsets = [0, 160], sizes = [8, 32], strides = [1, 1]} : vector<8x192xf32> to vector<8x32xf32>
    %83 = arith.mulf %72, %82 : vector<8x32xf32>
    %84 = arith.addf %81, %83 : vector<8x32xf32>
    %85 = math.tanh %84 : vector<8x32xf32>
    %cst_38 = arith.constant 1.000000e+00 : f32
    %86 = vector.broadcast %cst_38 : f32 to vector<8x32xf32>
    %87 = arith.subf %86, %80 : vector<8x32xf32>
    %88 = arith.mulf %87, %85 : vector<8x32xf32>
    %89 = arith.mulf %80, %3 : vector<8x32xf32>
    %90 = arith.addf %88, %89 : vector<8x32xf32>
    %c0_39 = arith.constant 0 : index
    %c0_40 = arith.constant 0 : index
    %91 = vector.load %arg17[%c0_39, %c0_40] : memref<8x32xf32, #tpu.memory_space<vmem>>, vector<8x32xf32>
    tpu.vector_store %arg17[%c0_39, %c0_40], %90 {strides = array<i32>} : memref<8x32xf32, #tpu.memory_space<vmem>>, vector<8x32xf32>,
    %c0_41 = arith.constant 0 : index
    %c0_42 = arith.constant 0 : index
    %92 = vector.load %arg15[%c0_41, %c0_42] : memref<32x128xf32, #tpu.memory_space<vmem>>, vector<32x128xf32>
    %cst_43 = arith.constant dense<0.000000e+00> : vector<8x128xf32>
    %93 = tpu.matmul %90, %92, %cst_43 {dimension_numbers = #tpu.dot_dimension_numbers<[1], [0], [0], [1], [0, 0, 1, 1], [], []>} : vector<8x32xf32>, vector<32x128xf32>, vector<8x128xf32> -> vector<8x128xf32>
    %c0_44 = arith.constant 0 : index
    %c192 = arith.constant 192 : index
    %94 = vector.load %arg14[%c0_44, %c192] : memref<1x320xf32, #tpu.memory_space<vmem>>, vector<1x128xf32>
    %95 = vector.broadcast %94 : vector<1x128xf32> to vector<8x128xf32>
    %96 = arith.addf %93, %95 : vector<8x128xf32>
    %c0_45 = arith.constant 0 : index
    %c0_46 = arith.constant 0 : index
    %97 = vector.load %arg10[%c0_45, %c0_46] : memref<49x64xf32, #tpu.memory_space<vmem>>, vector<49x64xf32>
    %cst_47 = arith.constant dense<0.000000e+00> : vector<32x64xf32>
    %98 = tpu.matmul %11, %97, %cst_47 {dimension_numbers = #tpu.dot_dimension_numbers<[1], [0], [0], [1], [0, 0, 1, 1], [], []>} : vector<32x49xf32>, vector<49x64xf32>, vector<32x64xf32> -> vector<32x64xf32>
    %99 = vector.extract_strided_slice %98 {offsets = [0, 0], sizes = [32, 32], strides = [1, 1]} : vector<32x64xf32> to vector<32x32xf32>
    %100 = vector.extract_strided_slice %98 {offsets = [0, 32], sizes = [32, 1], strides = [1, 1]} : vector<32x64xf32> to vector<32x1xf32>
    %101 = tpu.concatenate %90, %90, %90, %90 in 0 : vector<8x32xf32>, vector<8x32xf32>, vector<8x32xf32>, vector<8x32xf32> -> vector<32x32xf32>
    %102 = arith.mulf %101, %99 : vector<32x32xf32>
    %cst_48 = arith.constant dense<0.000000e+00> : vector<32xf32>
    %103 = vector.multi_reduction <add>, %102, %cst_48 [1] : vector<32x32xf32> to vector<32xf32>
    %104 = vector.shape_cast %103 : vector<32xf32> to vector<32x1xf32>
    %105 = arith.addf %104, %100 : vector<32x1xf32>
    %106 = tpu.iota {dimensions = array<i32: 1>} : vector<8x128xi32>
    %c6_i32 = arith.constant 6 : i32
    %107 = vector.broadcast %c6_i32 : i32 to vector<8x128xi32>
    %108 = arith.cmpi eq, %106, %107 : vector<8x128xi32>
    %109 = vector.extract_strided_slice %105 {offsets = [0, 0], sizes = [8, 1], strides = [1, 1]} : vector<32x1xf32> to vector<8x1xf32>
    %cst_49 = arith.constant 0.000000e+00 : f32
    %110 = vector.shape_cast %109 : vector<8x1xf32> to vector<8x1xf32>
    %111 = vector.broadcast %110 : vector<8x1xf32> to vector<8x128xf32>
    %112 = vector.broadcast %cst_49 : f32 to vector<8x128xf32>
    %113 = arith.select %108, %111, %112 : vector<8x128xi1>, vector<8x128xf32>
    %114 = arith.addf %96, %113 : vector<8x128xf32>
    %c7_i32 = arith.constant 7 : i32
    %115 = vector.broadcast %c7_i32 : i32 to vector<8x128xi32>
    %116 = arith.cmpi eq, %106, %115 : vector<8x128xi32>
    %117 = vector.extract_strided_slice %105 {offsets = [8, 0], sizes = [8, 1], strides = [1, 1]} : vector<32x1xf32> to vector<8x1xf32>
    %cst_50 = arith.constant 0.000000e+00 : f32
    %118 = vector.shape_cast %117 : vector<8x1xf32> to vector<8x1xf32>
    %119 = vector.broadcast %118 : vector<8x1xf32> to vector<8x128xf32>
    %120 = vector.broadcast %cst_50 : f32 to vector<8x128xf32>
    %121 = arith.select %116, %119, %120 : vector<8x128xi1>, vector<8x128xf32>
    %122 = arith.addf %114, %121 : vector<8x128xf32>
    %c8_i32 = arith.constant 8 : i32
    %123 = vector.broadcast %c8_i32 : i32 to vector<8x128xi32>
    %124 = arith.cmpi eq, %106, %123 : vector<8x128xi32>
    %125 = vector.extract_strided_slice %105 {offsets = [16, 0], sizes = [8, 1], strides = [1, 1]} : vector<32x1xf32> to vector<8x1xf32>
    %cst_51 = arith.constant 0.000000e+00 : f32
    %126 = vector.shape_cast %125 : vector<8x1xf32> to vector<8x1xf32>
    %127 = vector.broadcast %126 : vector<8x1xf32> to vector<8x128xf32>
    %128 = vector.broadcast %cst_51 : f32 to vector<8x128xf32>
    %129 = arith.select %124, %127, %128 : vector<8x128xi1>, vector<8x128xf32>
    %130 = arith.addf %122, %129 : vector<8x128xf32>
    %c9_i32 = arith.constant 9 : i32
    %131 = vector.broadcast %c9_i32 : i32 to vector<8x128xi32>
    %132 = arith.cmpi eq, %106, %131 : vector<8x128xi32>
    %133 = vector.extract_strided_slice %105 {offsets = [24, 0], sizes = [8, 1], strides = [1, 1]} : vector<32x1xf32> to vector<8x1xf32>
    %cst_52 = arith.constant 0.000000e+00 : f32
    %134 = vector.shape_cast %133 : vector<8x1xf32> to vector<8x1xf32>
    %135 = vector.broadcast %134 : vector<8x1xf32> to vector<8x128xf32>
    %136 = vector.broadcast %cst_52 : f32 to vector<8x128xf32>
    %137 = arith.select %132, %135, %136 : vector<8x128xi1>, vector<8x128xf32>
    %138 = arith.addf %130, %137 : vector<8x128xf32>
    %c0_53 = arith.constant 0 : index
    %c0_54 = arith.constant 0 : index
    %139 = vector.load %arg16[%c0_53, %c0_54] : memref<8x128xf32, #tpu.memory_space<vmem>>, vector<8x128xf32>
    tpu.vector_store %arg16[%c0_53, %c0_54], %138 {strides = array<i32>} : memref<8x128xf32, #tpu.memory_space<vmem>>, vector<8x128xf32>,
    return
  }
  func.func @transform_0(%arg0: i32, %arg1: i32) -> (i32, i32) {
    %c8_i32 = arith.constant 8 : i32
    %0 = arith.muli %arg0, %c8_i32 : i32
    %1 = arith.addi %0, %arg1 : i32
    %c0_i32 = arith.constant 0 : i32
    %c0_i32_0 = arith.constant 0 : i32
    return %1, %c0_i32 : i32, i32
  }
  func.func @transform_1(%arg0: i32, %arg1: i32) -> (i32, i32) {
    %c8_i32 = arith.constant 8 : i32
    %0 = arith.muli %arg0, %c8_i32 : i32
    %1 = arith.addi %0, %arg1 : i32
    %c0_i32 = arith.constant 0 : i32
    %c0_i32_0 = arith.constant 0 : i32
    return %1, %c0_i32 : i32, i32
  }
  func.func @transform_2(%arg0: i32, %arg1: i32) -> (i32, i32) {
    %c8_i32 = arith.constant 8 : i32
    %0 = arith.muli %arg0, %c8_i32 : i32
    %1 = arith.addi %0, %arg1 : i32
    %c0_i32 = arith.constant 0 : i32
    %c0_i32_0 = arith.constant 0 : i32
    return %1, %c0_i32 : i32, i32
  }
  func.func @transform_3(%arg0: i32, %arg1: i32) -> (i32, i32) {
    %c0_i32 = arith.constant 0 : i32
    %c0_i32_0 = arith.constant 0 : i32
    return %arg0, %c0_i32 : i32, i32
  }
  func.func @transform_4(%arg0: i32, %arg1: i32) -> (i32, i32) {
    %c0_i32 = arith.constant 0 : i32
    %c0_i32_0 = arith.constant 0 : i32
    %c0_i32_1 = arith.constant 0 : i32
    return %c0_i32, %c0_i32_0 : i32, i32
  }
  func.func @transform_5(%arg0: i32, %arg1: i32) -> (i32, i32) {
    %c0_i32 = arith.constant 0 : i32
    %c0_i32_0 = arith.constant 0 : i32
    %c0_i32_1 = arith.constant 0 : i32
    return %c0_i32, %c0_i32_0 : i32, i32
  }
  func.func @transform_6(%arg0: i32, %arg1: i32) -> (i32, i32) {
    %c0_i32 = arith.constant 0 : i32
    %c0_i32_0 = arith.constant 0 : i32
    %c0_i32_1 = arith.constant 0 : i32
    return %c0_i32, %c0_i32_0 : i32, i32
  }
  func.func @transform_7(%arg0: i32, %arg1: i32) -> (i32, i32) {
    %c0_i32 = arith.constant 0 : i32
    %c0_i32_0 = arith.constant 0 : i32
    %c0_i32_1 = arith.constant 0 : i32
    return %c0_i32, %c0_i32_0 : i32, i32
  }
  func.func @transform_8(%arg0: i32, %arg1: i32) -> (i32, i32) {
    %c0_i32 = arith.constant 0 : i32
    %c0_i32_0 = arith.constant 0 : i32
    %c0_i32_1 = arith.constant 0 : i32
    return %c0_i32, %c0_i32_0 : i32, i32
  }
  func.func @transform_9(%arg0: i32, %arg1: i32) -> (i32, i32) {
    %c0_i32 = arith.constant 0 : i32
    %c0_i32_0 = arith.constant 0 : i32
    %c0_i32_1 = arith.constant 0 : i32
    return %c0_i32, %c0_i32_0 : i32, i32
  }
  func.func @transform_10(%arg0: i32, %arg1: i32) -> (i32, i32) {
    %c0_i32 = arith.constant 0 : i32
    %c0_i32_0 = arith.constant 0 : i32
    %c0_i32_1 = arith.constant 0 : i32
    return %c0_i32, %c0_i32_0 : i32, i32
  }
  func.func @transform_11(%arg0: i32, %arg1: i32) -> (i32, i32) {
    %c0_i32 = arith.constant 0 : i32
    %c0_i32_0 = arith.constant 0 : i32
    %c0_i32_1 = arith.constant 0 : i32
    return %c0_i32, %c0_i32_0 : i32, i32
  }
  func.func @transform_12(%arg0: i32, %arg1: i32) -> (i32, i32) {
    %c0_i32 = arith.constant 0 : i32
    %c0_i32_0 = arith.constant 0 : i32
    %c0_i32_1 = arith.constant 0 : i32
    return %c0_i32, %c0_i32_0 : i32, i32
  }
  func.func @transform_13(%arg0: i32, %arg1: i32) -> (i32, i32) {
    %c0_i32 = arith.constant 0 : i32
    %c0_i32_0 = arith.constant 0 : i32
    %c0_i32_1 = arith.constant 0 : i32
    return %c0_i32, %c0_i32_0 : i32, i32
  }
  func.func @transform_14(%arg0: i32, %arg1: i32) -> (i32, i32) {
    %c8_i32 = arith.constant 8 : i32
    %0 = arith.muli %arg0, %c8_i32 : i32
    %1 = arith.addi %0, %arg1 : i32
    %c0_i32 = arith.constant 0 : i32
    %c0_i32_0 = arith.constant 0 : i32
    return %1, %c0_i32 : i32, i32
  }
  func.func @transform_15(%arg0: i32, %arg1: i32) -> (i32, i32) {
    %c0_i32 = arith.constant 0 : i32
    %c0_i32_0 = arith.constant 0 : i32
    return %arg0, %c0_i32 : i32, i32
  }
}

</mosaic_0001>

<llo_original>
// kernel: tpu_custom_call.1
$region0: #{tpu_custom_call.1}
  #allocation0 [shape = 'u32[]', space=smem, size = 0x4, offset = 0x4, fixed_abs, tag = 'smem constant byte address 0x4 - core index']
  #allocation1 [shape = 'u32[144,128]{1,0:T(1,128)}', space=vmem, size = 0x12000, scoped, tag = 'internal scratch']
  %s0 = inlined_call_operand.vmem [shape: f32[128,24], index: 0, kind: input, shape index: {}]
  %s1 = inlined_call_operand.vmem [shape: f32[512,9], index: 1, kind: input, shape index: {}]
  %s2 = inlined_call_operand.vmem [shape: f32[256,9], index: 2, kind: input, shape index: {}]
  %s3 = inlined_call_operand.vmem [shape: f32[16,32], index: 3, kind: input, shape index: {}]
  %s4 = inlined_call_operand.vmem [shape: f32[9,256], index: 4, kind: input, shape index: {}]
  %s5 = inlined_call_operand.vmem [shape: f32[24,32], index: 5, kind: input, shape index: {}]
  %s6 = inlined_call_operand.vmem [shape: f32[9,49], index: 6, kind: input, shape index: {}]
  %s7 = inlined_call_operand.vmem [shape: f32[49,256], index: 7, kind: input, shape index: {}]
  %s8 = inlined_call_operand.vmem [shape: f32[49,64], index: 8, kind: input, shape index: {}]
  %s9 = inlined_call_operand.vmem [shape: f32[9,17], index: 9, kind: input, shape index: {}]
  %s10 = inlined_call_operand.vmem [shape: f32[17,256], index: 10, kind: input, shape index: {}]
  %s11 = inlined_call_operand.vmem [shape: f32[64,192], index: 11, kind: input, shape index: {}]
  %s12 = inlined_call_operand.vmem [shape: f32[1,320], index: 12, kind: input, shape index: {}]
  %s13 = inlined_call_operand.vmem [shape: f32[32,128], index: 13, kind: input, shape index: {}]
  %s14 = inlined_call_operand.hbm [shape: f32[128,128], index: 14, kind: output, shape index: {0}]
  %s15 = inlined_call_operand.hbm [shape: f32[16,32], index: 15, kind: output, shape index: {1}]
  %16 = xla_tuple %s14, %s15
  %s17 = sld [smem:[#allocation0]]
  $region101: #{tpu_custom_call.1} parent=0
    _
  %s19 = ssub.s32 1, %s17
  %s20 = scalar_select 0, %s19, %s17
  $region1: #{tpu_custom_call.1} parent=0
    #allocation2 [shape = 'u8[8192]{0}', space=vmem, size = 0x2000, scoped, tag = 'output window, operand 0']
    #allocation3 [shape = 's32[2]{0}', space=sflag, size = 0x8, scoped, tag = 'scoped memory for tpu_custom_call.1']
    #allocation4 [shape = 'u8[8192]{0}', space=vmem, size = 0x2000, scoped, tag = 'output window, operand 1']
    #allocation5 [shape = 's32[2]{0}', space=sflag, size = 0x8, scoped, tag = 'scoped memory for tpu_custom_call.1']
    %21 = vsyncpa [#allocation3], 0
    %s22 = scalar_lea.sflag [#allocation3], 1
    %23 = vsyncpa %s22, 0
    %24 = vsyncpa [#allocation5], 0
    %s25 = scalar_lea.sflag [#allocation5], 1
    %26 = vsyncpa %s25, 0
    loop: start=0, step=1, limit=18
    $region2: #{tpu_custom_call.1} parent=1 // loop_pre_header
      _
    $region3: #{tpu_custom_call.1} parent=1 // loop_header
      %s28 = sphi 0, %s32
      %p29 = scmp.ge.s32.totalorder %s28, 18
      %s35 = sphi 0, %s47
      %s36 = sphi 0, %s43
      %s37 = sphi 0, %s35
      %s38 = sphi 0, %s36
      %s39 = sphi 0, %s37
      %s40 = sphi 0, %s38
      %s54 = sphi 0, %s56
      %s57 = sphi 0, %s54
      %s58 = sphi 0, %s57
      %s74 = sphi 0, %s58
      %s84 = sphi 0, %s86
      %s87 = sphi 0, %s84
      %s88 = sphi 0, %s87
      %s104 = sphi 0, %s88
      %s114 = sphi 0, %s116
      %s117 = sphi 0, %s114
      %s118 = sphi 0, %s117
      %s134 = sphi 0, %s118
      %s140 = sphi 0, %s142
      %s143 = sphi 0, %s140
      %s144 = sphi 0, %s143
      %s160 = sphi 0, %s144
      %s164 = sphi 0, %s164
      %s166 = sphi 0, %s164
      %s167 = sphi 0, %s166
      %s181 = sphi 0, %s167
      %s185 = sphi 0, %s185
      %s187 = sphi 0, %s185
      %s188 = sphi 0, %s187
      %s202 = sphi 0, %s188
      %s206 = sphi 0, %s206
      %s208 = sphi 0, %s206
      %s209 = sphi 0, %s208
      %s223 = sphi 0, %s209
      %s227 = sphi 0, %s227
      %s229 = sphi 0, %s227
      %s230 = sphi 0, %s229
      %s244 = sphi 0, %s230
      %s248 = sphi 0, %s248
      %s250 = sphi 0, %s248
      %s251 = sphi 0, %s250
      %s265 = sphi 0, %s251
      %s269 = sphi 0, %s269
      %s271 = sphi 0, %s269
      %s272 = sphi 0, %s271
      %s286 = sphi 0, %s272
      %s290 = sphi 0, %s290
      %s292 = sphi 0, %s290
      %s293 = sphi 0, %s292
      %s307 = sphi 0, %s293
      %s311 = sphi 0, %s311
      %s313 = sphi 0, %s311
      %s314 = sphi 0, %s313
      %s328 = sphi 0, %s314
      %s332 = sphi 0, %s332
      %s334 = sphi 0, %s332
      %s335 = sphi 0, %s334
      %s349 = sphi 0, %s335
      %s353 = sphi 0, %s353
      %s355 = sphi 0, %s353
      %s356 = sphi 0, %s355
      %s370 = sphi 0, %s356
      %s380 = sphi 0, %s382
      %s383 = sphi 0, %s380
      %s384 = sphi 0, %s383
      %s400 = sphi 0, %s384
      %s406 = sphi 0, %s408
      %s409 = sphi 0, %s406
      %s410 = sphi 0, %s409
      %s426 = sphi 0, %s410
    $region4: #{tpu_custom_call.1} parent=1 // loop_header_branch
      %31 = sbr.rel (%p29) target = $region8
    $region5: #{tpu_custom_call.1} parent=1 // loop_body
      %s33 = ssub.s32 %s28, 1
      %s34 = ssub.s32 %s28, 2
      %s41 = sadd.s32 1, %s36
      %p42 = scmp.ge.s32.totalorder %s41, 8
      %s43 = scalar_select %p42, 0, %s41
      %s44 = sadd.s32 1, %s35
      %s45 = scalar_select %p42, %s44, %s35
      %p46 = scmp.ge.s32.totalorder %s45, 2
      %s47 = scalar_select %p46, 0, %s45
      %s48 = smul.u32 %s35, 8
      %s49 = sadd.s32 %s48, %s36
      %s50 = smul.u32 %s47, 8
      %s51 = sadd.s32 %s50, %s43
      %s52 = ssub.s32 %s49, %s51
      %p53 = scmp.eq.s32.totalorder %s52, 0
      %s55 = sadd.s32 %s54, 1
      %s56 = scalar_select %p53, %s54, %s55
      %p59 = pneg %p53
      %p60 = scmp.eq.s32.totalorder %s28, 15
      %p61 = por %p59, %p60
      %p62 = scmp.ne.s32.totalorder %s54, %s57
      %p63 = scmp.eq.s32.totalorder %s28, 0
      %p64 = por %p62, %p63
      %p65 = scmp.ne.s32.totalorder %s54, %s57
      %p66 = scmp.eq.s32.totalorder %s33, 15
      %p67 = por %p65, %p66
      %p68 = scmp.ne.s32.totalorder %s57, %s58
      %p69 = scmp.eq.s32.totalorder %s33, 0
      %p70 = por %p68, %p69
      %p71 = scmp.ne.s32.totalorder %s57, %s58
      %p72 = scmp.eq.s32.totalorder %s34, 15
      %p73 = por %p71, %p72
      %p75 = scmp.ne.s32.totalorder %s58, %s74
      %p76 = scmp.eq.s32.totalorder %s34, 0
      %p77 = por %p75, %p76
      %s78 = smul.u32 %s35, 8
      %s79 = sadd.s32 %s78, %s36
      %s80 = smul.u32 %s47, 8
      %s81 = sadd.s32 %s80, %s43
      %s82 = ssub.s32 %s79, %s81
      %p83 = scmp.eq.s32.totalorder %s82, 0
      %s85 = sadd.s32 %s84, 1
      %s86 = scalar_select %p83, %s84, %s85
      %p89 = pneg %p83
      %p90 = scmp.eq.s32.totalorder %s28, 15
      %p91 = por %p89, %p90
      %p92 = scmp.ne.s32.totalorder %s84, %s87
      %p93 = scmp.eq.s32.totalorder %s28, 0
      %p94 = por %p92, %p93
      %p95 = scmp.ne.s32.totalorder %s84, %s87
      %p96 = scmp.eq.s32.totalorder %s33, 15
      %p97 = por %p95, %p96
      %p98 = scmp.ne.s32.totalorder %s87, %s88
      %p99 = scmp.eq.s32.totalorder %s33, 0
      %p100 = por %p98, %p99
      %p101 = scmp.ne.s32.totalorder %s87, %s88
      %p102 = scmp.eq.s32.totalorder %s34, 15
      %p103 = por %p101, %p102
      %p105 = scmp.ne.s32.totalorder %s88, %s104
      %p106 = scmp.eq.s32.totalorder %s34, 0
      %p107 = por %p105, %p106
      %s108 = smul.u32 %s35, 8
      %s109 = sadd.s32 %s108, %s36
      %s110 = smul.u32 %s47, 8
      %s111 = sadd.s32 %s110, %s43
      %s112 = ssub.s32 %s109, %s111
      %p113 = scmp.eq.s32.totalorder %s112, 0
      %s115 = sadd.s32 %s114, 1
      %s116 = scalar_select %p113, %s114, %s115
      %p119 = pneg %p113
      %p120 = scmp.eq.s32.totalorder %s28, 15
      %p121 = por %p119, %p120
      %p122 = scmp.ne.s32.totalorder %s114, %s117
      %p123 = scmp.eq.s32.totalorder %s28, 0
      %p124 = por %p122, %p123
      %p125 = scmp.ne.s32.totalorder %s114, %s117
      %p126 = scmp.eq.s32.totalorder %s33, 15
      %p127 = por %p125, %p126
      %p128 = scmp.ne.s32.totalorder %s117, %s118
      %p129 = scmp.eq.s32.totalorder %s33, 0
      %p130 = por %p128, %p129
      %p131 = scmp.ne.s32.totalorder %s117, %s118
      %p132 = scmp.eq.s32.totalorder %s34, 15
      %p133 = por %p131, %p132
      %p135 = scmp.ne.s32.totalorder %s118, %s134
      %p136 = scmp.eq.s32.totalorder %s34, 0
      %p137 = por %p135, %p136
      %s138 = ssub.s32 %s35, %s47
      %p139 = scmp.eq.s32.totalorder %s138, 0
      %s141 = sadd.s32 %s140, 1
      %s142 = scalar_select %p139, %s140, %s141
      %p145 = pneg %p139
      %p146 = scmp.eq.s32.totalorder %s28, 15
      %p147 = por %p145, %p146
      %p148 = scmp.ne.s32.totalorder %s140, %s143
      %p149 = scmp.eq.s32.totalorder %s28, 0
      %p150 = por %p148, %p149
      %p151 = scmp.ne.s32.totalorder %s140, %s143
      %p152 = scmp.eq.s32.totalorder %s33, 15
      %p153 = por %p151, %p152
      %p154 = scmp.ne.s32.totalorder %s143, %s144
      %p155 = scmp.eq.s32.totalorder %s33, 0
      %p156 = por %p154, %p155
      %p157 = scmp.ne.s32.totalorder %s143, %s144
      %p158 = scmp.eq.s32.totalorder %s34, 15
      %p159 = por %p157, %p158
      %p161 = scmp.ne.s32.totalorder %s144, %s160
      %p162 = scmp.eq.s32.totalorder %s34, 0
      %p163 = por %p161, %p162
      %s165 = sadd.s32 %s164, 1
      %p168 = scmp.eq.s32.totalorder %s28, 15
      %p169 = scmp.ne.s32.totalorder %s164, %s166
      %p170 = scmp.eq.s32.totalorder %s28, 0
      %p171 = por %p169, %p170
      %p172 = scmp.ne.s32.totalorder %s164, %s166
      %p173 = scmp.eq.s32.totalorder %s33, 15
      %p174 = por %p172, %p173
      %p175 = scmp.ne.s32.totalorder %s166, %s167
      %p176 = scmp.eq.s32.totalorder %s33, 0
      %p177 = por %p175, %p176
      %p178 = scmp.ne.s32.totalorder %s166, %s167
      %p179 = scmp.eq.s32.totalorder %s34, 15
      %p180 = por %p178, %p179
      %p182 = scmp.ne.s32.totalorder %s167, %s181
      %p183 = scmp.eq.s32.totalorder %s34, 0
      %p184 = por %p182, %p183
      %s186 = sadd.s32 %s185, 1
      %p189 = scmp.eq.s32.totalorder %s28, 15
      %p190 = scmp.ne.s32.totalorder %s185, %s187
      %p191 = scmp.eq.s32.totalorder %s28, 0
      %p192 = por %p190, %p191
      %p193 = scmp.ne.s32.totalorder %s185, %s187
      %p194 = scmp.eq.s32.totalorder %s33, 15
      %p195 = por %p193, %p194
      %p196 = scmp.ne.s32.totalorder %s187, %s188
      %p197 = scmp.eq.s32.totalorder %s33, 0
      %p198 = por %p196, %p197
      %p199 = scmp.ne.s32.totalorder %s187, %s188
      %p200 = scmp.eq.s32.totalorder %s34, 15
      %p201 = por %p199, %p200
      %p203 = scmp.ne.s32.totalorder %s188, %s202
      %p204 = scmp.eq.s32.totalorder %s34, 0
      %p205 = por %p203, %p204
      %s207 = sadd.s32 %s206, 1
      %p210 = scmp.eq.s32.totalorder %s28, 15
      %p211 = scmp.ne.s32.totalorder %s206, %s208
      %p212 = scmp.eq.s32.totalorder %s28, 0
      %p213 = por %p211, %p212
      %p214 = scmp.ne.s32.totalorder %s206, %s208
      %p215 = scmp.eq.s32.totalorder %s33, 15
      %p216 = por %p214, %p215
      %p217 = scmp.ne.s32.totalorder %s208, %s209
      %p218 = scmp.eq.s32.totalorder %s33, 0
      %p219 = por %p217, %p218
      %p220 = scmp.ne.s32.totalorder %s208, %s209
      %p221 = scmp.eq.s32.totalorder %s34, 15
      %p222 = por %p220, %p221
      %p224 = scmp.ne.s32.totalorder %s209, %s223
      %p225 = scmp.eq.s32.totalorder %s34, 0
      %p226 = por %p224, %p225
      %s228 = sadd.s32 %s227, 1
      %p231 = scmp.eq.s32.totalorder %s28, 15
      %p232 = scmp.ne.s32.totalorder %s227, %s229
      %p233 = scmp.eq.s32.totalorder %s28, 0
      %p234 = por %p232, %p233
      %p235 = scmp.ne.s32.totalorder %s227, %s229
      %p236 = scmp.eq.s32.totalorder %s33, 15
      %p237 = por %p235, %p236
      %p238 = scmp.ne.s32.totalorder %s229, %s230
      %p239 = scmp.eq.s32.totalorder %s33, 0
      %p240 = por %p238, %p239
      %p241 = scmp.ne.s32.totalorder %s229, %s230
      %p242 = scmp.eq.s32.totalorder %s34, 15
      %p243 = por %p241, %p242
      %p245 = scmp.ne.s32.totalorder %s230, %s244
      %p246 = scmp.eq.s32.totalorder %s34, 0
      %p247 = por %p245, %p246
      %s249 = sadd.s32 %s248, 1
      %p252 = scmp.eq.s32.totalorder %s28, 15
      %p253 = scmp.ne.s32.totalorder %s248, %s250
      %p254 = scmp.eq.s32.totalorder %s28, 0
      %p255 = por %p253, %p254
      %p256 = scmp.ne.s32.totalorder %s248, %s250
      %p257 = scmp.eq.s32.totalorder %s33, 15
      %p258 = por %p256, %p257
      %p259 = scmp.ne.s32.totalorder %s250, %s251
      %p260 = scmp.eq.s32.totalorder %s33, 0
      %p261 = por %p259, %p260
      %p262 = scmp.ne.s32.totalorder %s250, %s251
      %p263 = scmp.eq.s32.totalorder %s34, 15
      %p264 = por %p262, %p263
      %p266 = scmp.ne.s32.totalorder %s251, %s265
      %p267 = scmp.eq.s32.totalorder %s34, 0
      %p268 = por %p266, %p267
      %s270 = sadd.s32 %s269, 1
      %p273 = scmp.eq.s32.totalorder %s28, 15
      %p274 = scmp.ne.s32.totalorder %s269, %s271
      %p275 = scmp.eq.s32.totalorder %s28, 0
      %p276 = por %p274, %p275
      %p277 = scmp.ne.s32.totalorder %s269, %s271
      %p278 = scmp.eq.s32.totalorder %s33, 15
      %p279 = por %p277, %p278
      %p280 = scmp.ne.s32.totalorder %s271, %s272
      %p281 = scmp.eq.s32.totalorder %s33, 0
      %p282 = por %p280, %p281
      %p283 = scmp.ne.s32.totalorder %s271, %s272
      %p284 = scmp.eq.s32.totalorder %s34, 15
      %p285 = por %p283, %p284
      %p287 = scmp.ne.s32.totalorder %s272, %s286
      %p288 = scmp.eq.s32.totalorder %s34, 0
      %p289 = por %p287, %p288
      %s291 = sadd.s32 %s290, 1
      %p294 = scmp.eq.s32.totalorder %s28, 15
      %p295 = scmp.ne.s32.totalorder %s290, %s292
      %p296 = scmp.eq.s32.totalorder %s28, 0
      %p297 = por %p295, %p296
      %p298 = scmp.ne.s32.totalorder %s290, %s292
      %p299 = scmp.eq.s32.totalorder %s33, 15
      %p300 = por %p298, %p299
      %p301 = scmp.ne.s32.totalorder %s292, %s293
      %p302 = scmp.eq.s32.totalorder %s33, 0
      %p303 = por %p301, %p302
      %p304 = scmp.ne.s32.totalorder %s292, %s293
      %p305 = scmp.eq.s32.totalorder %s34, 15
      %p306 = por %p304, %p305
      %p308 = scmp.ne.s32.totalorder %s293, %s307
      %p309 = scmp.eq.s32.totalorder %s34, 0
      %p310 = por %p308, %p309
      %s312 = sadd.s32 %s311, 1
      %p315 = scmp.eq.s32.totalorder %s28, 15
      %p316 = scmp.ne.s32.totalorder %s311, %s313
      %p317 = scmp.eq.s32.totalorder %s28, 0
      %p318 = por %p316, %p317
      %p319 = scmp.ne.s32.totalorder %s311, %s313
      %p320 = scmp.eq.s32.totalorder %s33, 15
      %p321 = por %p319, %p320
      %p322 = scmp.ne.s32.totalorder %s313, %s314
      %p323 = scmp.eq.s32.totalorder %s33, 0
      %p324 = por %p322, %p323
      %p325 = scmp.ne.s32.totalorder %s313, %s314
      %p326 = scmp.eq.s32.totalorder %s34, 15
      %p327 = por %p325, %p326
      %p329 = scmp.ne.s32.totalorder %s314, %s328
      %p330 = scmp.eq.s32.totalorder %s34, 0
      %p331 = por %p329, %p330
      %s333 = sadd.s32 %s332, 1
      %p336 = scmp.eq.s32.totalorder %s28, 15
      %p337 = scmp.ne.s32.totalorder %s332, %s334
      %p338 = scmp.eq.s32.totalorder %s28, 0
      %p339 = por %p337, %p338
      %p340 = scmp.ne.s32.totalorder %s332, %s334
      %p341 = scmp.eq.s32.totalorder %s33, 15
      %p342 = por %p340, %p341
      %p343 = scmp.ne.s32.totalorder %s334, %s335
      %p344 = scmp.eq.s32.totalorder %s33, 0
      %p345 = por %p343, %p344
      %p346 = scmp.ne.s32.totalorder %s334, %s335
      %p347 = scmp.eq.s32.totalorder %s34, 15
      %p348 = por %p346, %p347
      %p350 = scmp.ne.s32.totalorder %s335, %s349
      %p351 = scmp.eq.s32.totalorder %s34, 0
      %p352 = por %p350, %p351
      %s354 = sadd.s32 %s353, 1
      %p357 = scmp.eq.s32.totalorder %s28, 15
      %p358 = scmp.ne.s32.totalorder %s353, %s355
      %p359 = scmp.eq.s32.totalorder %s28, 0
      %p360 = por %p358, %p359
      %p361 = scmp.ne.s32.totalorder %s353, %s355
      %p362 = scmp.eq.s32.totalorder %s33, 15
      %p363 = por %p361, %p362
      %p364 = scmp.ne.s32.totalorder %s355, %s356
      %p365 = scmp.eq.s32.totalorder %s33, 0
      %p366 = por %p364, %p365
      %p367 = scmp.ne.s32.totalorder %s355, %s356
      %p368 = scmp.eq.s32.totalorder %s34, 15
      %p369 = por %p367, %p368
      %p371 = scmp.ne.s32.totalorder %s356, %s370
      %p372 = scmp.eq.s32.totalorder %s34, 0
      %p373 = por %p371, %p372
      %s374 = smul.u32 %s35, 8
      %s375 = sadd.s32 %s374, %s36
      %s376 = smul.u32 %s47, 8
      %s377 = sadd.s32 %s376, %s43
      %s378 = ssub.s32 %s375, %s377
      %p379 = scmp.eq.s32.totalorder %s378, 0
      %s381 = sadd.s32 %s380, 1
      %s382 = scalar_select %p379, %s380, %s381
      %p385 = pneg %p379
      %p386 = scmp.eq.s32.totalorder %s28, 15
      %p387 = por %p385, %p386
      %p388 = scmp.ne.s32.totalorder %s380, %s383
      %p389 = scmp.eq.s32.totalorder %s28, 0
      %p390 = por %p388, %p389
      %p391 = scmp.ne.s32.totalorder %s380, %s383
      %p392 = scmp.eq.s32.totalorder %s33, 15
      %p393 = por %p391, %p392
      %p394 = scmp.ne.s32.totalorder %s383, %s384
      %p395 = scmp.eq.s32.totalorder %s33, 0
      %p396 = por %p394, %p395
      %p397 = scmp.ne.s32.totalorder %s383, %s384
      %p398 = scmp.eq.s32.totalorder %s34, 15
      %p399 = por %p397, %p398
      %p401 = scmp.ne.s32.totalorder %s384, %s400
      %p402 = scmp.eq.s32.totalorder %s34, 0
      %p403 = por %p401, %p402
      %s404 = ssub.s32 %s35, %s47
      %p405 = scmp.eq.s32.totalorder %s404, 0
      %s407 = sadd.s32 %s406, 1
      %s408 = scalar_select %p405, %s406, %s407
      %p411 = pneg %p405
      %p412 = scmp.eq.s32.totalorder %s28, 15
      %p413 = por %p411, %p412
      %p414 = scmp.ne.s32.totalorder %s406, %s409
      %p415 = scmp.eq.s32.totalorder %s28, 0
      %p416 = por %p414, %p415
      %p417 = scmp.ne.s32.totalorder %s406, %s409
      %p418 = scmp.eq.s32.totalorder %s33, 15
      %p419 = por %p417, %p418
      %p420 = scmp.ne.s32.totalorder %s409, %s410
      %p421 = scmp.eq.s32.totalorder %s33, 0
      %p422 = por %p420, %p421
      %p423 = scmp.ne.s32.totalorder %s409, %s410
      %p424 = scmp.eq.s32.totalorder %s34, 15
      %p425 = por %p423, %p424
      %p427 = scmp.ne.s32.totalorder %s410, %s426
      %p428 = scmp.eq.s32.totalorder %s34, 0
      %p429 = por %p427, %p428
      %p430 = scmp.le.s32.totalorder 1, %s28
      %p431 = scmp.lt.s32.totalorder %s28, 17
      %p432 = pnand %p430, %p431
      %p433 = pneg %p432
      // Predicated region
      $region9: #{tpu_custom_call.1} parent=5 // pred_check
        _
      $region10: #{tpu_custom_call.1} parent=5 // pred_check_branch
        %435 = sbr.rel (%p432) target = $region12
      $region11: #{tpu_custom_call.1} parent=5 // pred_region
        %s436 = ssub.s32 %s28, 1
        // Predicated region
        $region13: #{tpu_custom_call.1} parent=11 // pred_check
          %p437 = pneg %p177
        $region14: #{tpu_custom_call.1} parent=11 // pred_check_branch
          %439 = sbr.rel (%p437) target = $region16
        $region15: #{tpu_custom_call.1} parent=11 // pred_region
          _
        $region16: #{tpu_custom_call.1} parent=11 // pred_fallthru
          _
        // Predicated region
        $region17: #{tpu_custom_call.1} parent=11 // pred_check
          %p440 = pneg %p198
        $region18: #{tpu_custom_call.1} parent=11 // pred_check_branch
          %442 = sbr.rel (%p440) target = $region20
        $region19: #{tpu_custom_call.1} parent=11 // pred_region
          _
        $region20: #{tpu_custom_call.1} parent=11 // pred_fallthru
          _
        // Predicated region
        $region21: #{tpu_custom_call.1} parent=11 // pred_check
          %p443 = pneg %p219
        $region22: #{tpu_custom_call.1} parent=11 // pred_check_branch
          %445 = sbr.rel (%p443) target = $region24
        $region23: #{tpu_custom_call.1} parent=11 // pred_region
          _
        $region24: #{tpu_custom_call.1} parent=11 // pred_fallthru
          _
        // Predicated region
        $region25: #{tpu_custom_call.1} parent=11 // pred_check
          %p446 = pneg %p240
        $region26: #{tpu_custom_call.1} parent=11 // pred_check_branch
          %448 = sbr.rel (%p446) target = $region28
        $region27: #{tpu_custom_call.1} parent=11 // pred_region
          _
        $region28: #{tpu_custom_call.1} parent=11 // pred_fallthru
          _
        // Predicated region
        $region29: #{tpu_custom_call.1} parent=11 // pred_check
          %p449 = pneg %p261
        $region30: #{tpu_custom_call.1} parent=11 // pred_check_branch
          %451 = sbr.rel (%p449) target = $region32
        $region31: #{tpu_custom_call.1} parent=11 // pred_region
          _
        $region32: #{tpu_custom_call.1} parent=11 // pred_fallthru
          _
        // Predicated region
        $region33: #{tpu_custom_call.1} parent=11 // pred_check
          %p452 = pneg %p282
        $region34: #{tpu_custom_call.1} parent=11 // pred_check_branch
          %454 = sbr.rel (%p452) target = $region36
        $region35: #{tpu_custom_call.1} parent=11 // pred_region
          _
        $region36: #{tpu_custom_call.1} parent=11 // pred_fallthru
          _
        // Predicated region
        $region37: #{tpu_custom_call.1} parent=11 // pred_check
          %p455 = pneg %p303
        $region38: #{tpu_custom_call.1} parent=11 // pred_check_branch
          %457 = sbr.rel (%p455) target = $region40
        $region39: #{tpu_custom_call.1} parent=11 // pred_region
          _
        $region40: #{tpu_custom_call.1} parent=11 // pred_fallthru
          _
        // Predicated region
        $region41: #{tpu_custom_call.1} parent=11 // pred_check
          %p458 = pneg %p324
        $region42: #{tpu_custom_call.1} parent=11 // pred_check_branch
          %460 = sbr.rel (%p458) target = $region44
        $region43: #{tpu_custom_call.1} parent=11 // pred_region
          _
        $region44: #{tpu_custom_call.1} parent=11 // pred_fallthru
          _
        // Predicated region
        $region45: #{tpu_custom_call.1} parent=11 // pred_check
          %p461 = pneg %p345
        $region46: #{tpu_custom_call.1} parent=11 // pred_check_branch
          %463 = sbr.rel (%p461) target = $region48
        $region47: #{tpu_custom_call.1} parent=11 // pred_region
          _
        $region48: #{tpu_custom_call.1} parent=11 // pred_fallthru
          _
        // Predicated region
        $region49: #{tpu_custom_call.1} parent=11 // pred_check
          %p464 = pneg %p366
        $region50: #{tpu_custom_call.1} parent=11 // pred_check_branch
          %466 = sbr.rel (%p464) target = $region52
        $region51: #{tpu_custom_call.1} parent=11 // pred_region
          _
        $region52: #{tpu_custom_call.1} parent=11 // pred_fallthru
          _
      $region12: #{tpu_custom_call.1} parent=5 // pred_fallthru
        _
      %p467 = scmp.lt.s32.totalorder %s28, 16
      // Predicated region
      $region53: #{tpu_custom_call.1} parent=5 // pred_check
        %p468 = pneg %p467
      $region54: #{tpu_custom_call.1} parent=5 // pred_check_branch
        %470 = sbr.rel (%p468) target = $region56
      $region55: #{tpu_custom_call.1} parent=5 // pred_region
        // Predicated region
        $region57: #{tpu_custom_call.1} parent=55 // pred_check
          %p471 = pneg %p64
        $region58: #{tpu_custom_call.1} parent=55 // pred_check_branch
          %473 = sbr.rel (%p471) target = $region60
        $region59: #{tpu_custom_call.1} parent=55 // pred_region
          %s474 = smul.u32 %s35, 8
          %s475 = sadd.s32 %s474, %s36
          %p476 = scmp.lt.s32.totalorder %s475, 15
          %s477 = scalar_select %p476, %s475, 15
          %s478 = smul.addr %s477, 8
          %s479 = scalar_lea.vmem %s0, %s478
          %s480 = smul.u32 %s35, 8
          %s481 = sadd.s32 %s480, %s36
        $region60: #{tpu_custom_call.1} parent=55 // pred_fallthru
          _
        // Predicated region
        $region61: #{tpu_custom_call.1} parent=55 // pred_check
          %p482 = pneg %p94
        $region62: #{tpu_custom_call.1} parent=55 // pred_check_branch
          %484 = sbr.rel (%p482) target = $region64
        $region63: #{tpu_custom_call.1} parent=55 // pred_region
          %s485 = smul.u32 %s35, 8
          %s486 = sadd.s32 %s485, %s36
          %s487 = smul.u32 4, %s486
          %p488 = scmp.lt.s32.totalorder %s487, 63
          %s489 = scalar_select %p488, %s487, 63
          %s490 = smul.addr %s489, 8
          %s491 = scalar_lea.vmem %s1, %s490
          %s492 = smul.u32 %s35, 8
          %s493 = sadd.s32 %s492, %s36
          %s494 = smul.u32 4, %s493
        $region64: #{tpu_custom_call.1} parent=55 // pred_fallthru
          _
        // Predicated region
        $region65: #{tpu_custom_call.1} parent=55 // pred_check
          %p495 = pneg %p124
        $region66: #{tpu_custom_call.1} parent=55 // pred_check_branch
          %497 = sbr.rel (%p495) target = $region68
        $region67: #{tpu_custom_call.1} parent=55 // pred_region
          %s498 = smul.u32 %s35, 8
          %s499 = sadd.s32 %s498, %s36
          %s500 = smul.u32 2, %s499
          %p501 = scmp.lt.s32.totalorder %s500, 31
          %s502 = scalar_select %p501, %s500, 31
          %s503 = smul.addr %s502, 8
          %s504 = scalar_lea.vmem %s2, %s503
          %s505 = smul.u32 %s35, 8
          %s506 = sadd.s32 %s505, %s36
          %s507 = smul.u32 2, %s506
        $region68: #{tpu_custom_call.1} parent=55 // pred_fallthru
          _
        // Predicated region
        $region69: #{tpu_custom_call.1} parent=55 // pred_check
          %p508 = pneg %p150
        $region70: #{tpu_custom_call.1} parent=55 // pred_check_branch
          %510 = sbr.rel (%p508) target = $region72
        $region71: #{tpu_custom_call.1} parent=55 // pred_region
          %p511 = scmp.lt.s32.totalorder %s35, 1
          %s512 = scalar_select %p511, %s35, 1
          %s513 = smul.addr %s512, 8
          %s514 = scalar_lea.vmem %s3, %s513
        $region72: #{tpu_custom_call.1} parent=55 // pred_fallthru
          _
      $region56: #{tpu_custom_call.1} parent=5 // pred_fallthru
        _
      %p515 = scmp.le.s32.totalorder 1, %s28
      %p516 = scmp.lt.s32.totalorder %s28, 17
      %p517 = pnand %p515, %p516
      %p518 = pneg %p517
      // Predicated region
      $region73: #{tpu_custom_call.1} parent=5 // pred_check
        _
      $region74: #{tpu_custom_call.1} parent=5 // pred_check_branch
        %520 = sbr.rel (%p517) target = $region76
      $region75: #{tpu_custom_call.1} parent=5 // pred_region
        %s521 = ssub.s32 %s28, 1
        %s522 = smul.u32 %s37, 8
        %s523 = sadd.s32 %s522, %s38
        %p524 = scmp.lt.s32.totalorder %s523, 15
        %s525 = scalar_select %p524, %s523, 15
        %s526 = smul.addr %s525, 8
        %s527 = scalar_lea.vmem %s0, %s526
        %p528 = pneg %p70
        %p529 = pneg %p67
        %s530 = smul.u32 %s37, 8
        %s531 = sadd.s32 %s530, %s38
        %s532 = smul.u32 4, %s531
        %p533 = scmp.lt.s32.totalorder %s532, 63
        %s534 = scalar_select %p533, %s532, 63
        %s535 = smul.addr %s534, 8
        %s536 = scalar_lea.vmem %s1, %s535
        %p537 = pneg %p100
        %p538 = pneg %p97
        %s539 = smul.u32 %s37, 8
        %s540 = sadd.s32 %s539, %s38
        %s541 = smul.u32 2, %s540
        %p542 = scmp.lt.s32.totalorder %s541, 31
        %s543 = scalar_select %p542, %s541, 31
        %s544 = smul.addr %s543, 8
        %s545 = scalar_lea.vmem %s2, %s544
        %p546 = pneg %p130
        %p547 = pneg %p127
        %p548 = scmp.lt.s32.totalorder %s37, 1
        %s549 = scalar_select %p548, %s37, 1
        %s550 = smul.addr %s549, 8
        %s551 = scalar_lea.vmem %s3, %s550
        %p552 = pneg %p156
        %p553 = pneg %p153
        %p554 = pneg %p177
        %p555 = pneg %p174
        %p556 = pneg %p198
        %p557 = pneg %p195
        %p558 = pneg %p219
        %p559 = pneg %p216
        %p560 = pneg %p240
        %p561 = pneg %p237
        %p562 = pneg %p261
        %p563 = pneg %p258
        %p564 = pneg %p282
        %p565 = pneg %p279
        %p566 = pneg %p303
        %p567 = pneg %p300
        %p568 = pneg %p324
        %p569 = pneg %p321
        %p570 = pneg %p345
        %p571 = pneg %p342
        %p572 = pneg %p366
        %p573 = pneg %p363
        %p574 = pneg %p396
        %p575 = pneg %p393
        %s576 = sand.u32 %s383, 1
        %s577 = scalar_lea.sflag [#allocation3], %s576
        %s578 = sand.u32 %s383, 1
        %s579 = smul.addr %s578, 8
        %s580 = scalar_lea.vmem [#allocation2], %s579
        %p581 = pneg %p422
        %p582 = pneg %p419
        %s583 = sand.u32 %s409, 1
        %s584 = scalar_lea.sflag [#allocation5], %s583
        %s585 = sand.u32 %s409, 1
        %s586 = smul.addr %s585, 8
        %s587 = scalar_lea.vmem [#allocation4], %s586
        %s588 = smul.u32 %s37, 8
        %s589 = sadd.s32 %s588, %s38
        %p590 = scmp.lt.s32.totalorder %s589, 15
        %s591 = scalar_select %p590, %s589, 15
        %s592 = smul.addr %s591, 8
        %s593 = scalar_lea.vmem %s0, %s592
        %s594 = smul.u32 %s37, 8
        %s595 = sadd.s32 %s594, %s38
        %s596 = smul.u32 %s37, 8
        %s597 = sadd.s32 %s596, %s38
        %s598 = smul.u32 4, %s597
        %p599 = scmp.lt.s32.totalorder %s598, 63
        %s600 = scalar_select %p599, %s598, 63
        %s601 = smul.addr %s600, 8
        %s602 = scalar_lea.vmem %s1, %s601
        %s603 = smul.u32 %s37, 8
        %s604 = sadd.s32 %s603, %s38
        %s605 = smul.u32 4, %s604
        %s606 = smul.u32 %s37, 8
        %s607 = sadd.s32 %s606, %s38
        %s608 = smul.u32 2, %s607
        %p609 = scmp.lt.s32.totalorder %s608, 31
        %s610 = scalar_select %p609, %s608, 31
        %s611 = smul.addr %s610, 8
        %s612 = scalar_lea.vmem %s2, %s611
        %s613 = smul.u32 %s37, 8
        %s614 = sadd.s32 %s613, %s38
        %s615 = smul.u32 2, %s614
        %p616 = scmp.lt.s32.totalorder %s37, 1
        %s617 = scalar_select %p616, %s37, 1
        %s618 = smul.addr %s617, 8
        %s619 = scalar_lea.vmem %s3, %s618
        %s620 = smul.u32 %s37, 8
        %s621 = sadd.s32 %s620, %s38
        %p622 = scmp.eq.s32.totalorder %s38, 0
        // Predicated region
        $region77: #{tpu_custom_call.1} parent=75 // pred_check
          %p623 = pneg %p622
        $region78: #{tpu_custom_call.1} parent=75 // pred_check_branch
          %625 = sbr.rel (%p623) target = $region80
        $region79: #{tpu_custom_call.1} parent=75 // pred_region
          %v626 = vld [vmem:[%s619] sm:$0xff]
          %vm627 = vcmask 261120
          %628 = vst.msk [vmem:[%s587] sm:$0xff] %vm627, %v626
        $region80: #{tpu_custom_call.1} parent=75 // pred_fallthru
          _
        %v629 = vld [vmem:[%s587] sm:$0xff]
        %v630 = vld [vmem:[%s593] sm:$0xff]
        %v631 = vld [vmem:[%s5] sm:$0xff]
        %v632 = vld [vmem:[%s5 + $0x8] sm:$0xff]
        %v633 = vld [vmem:[%s5 + $0x10] sm:$0xff]
        %v634 = vld [vmem:[%s602] sm:$0xff]
        %v635 = vld [vmem:[%s602 + $0x8] sm:$0xff]
        %v636 = vld [vmem:[%s602 + $0x10] sm:$0xff]
        %v637 = vld [vmem:[%s602 + $0x18] sm:$0xff]
        %v638 = vld [vmem:[%s6] sm:$0xff]
        %v639 = vld [vmem:[%s6 + $0x8] sm:$0x1]
        %vm640 = vcmask 72704
        %v642 = vsel %vm640, %v634, 0
        %v645 = vsel %vm640, %v635, 0
        %v648 = vsel %vm640, %v636, 0
        %v651 = vsel %vm640, %v637, 0
        %vm653 = vcmask 1040384
        %v655 = vsel %vm653, %v639, 0
        %657 = vmatprep.subr.mxu0 0.0
        %658 = vmatpush1.msra.mxu0 %v638
        %659 = vmatprep.subr.mxu0 0.0
        %660 = vmatpush1.msra.mxu0 %v655
        %661 = vmatprep.subr.mxu0 0.0
        %662 = vmatpush1.msra.mxu0 0.0
        %663 = vmatprep.subr.mxu0 0.0
        %664 = vmatpush1.msra.mxu0 0.0
        %665 = vmatprep.subr.mxu0 0.0
        %666 = vmatpush1.msra.mxu0 0.0
        %667 = vmatprep.subr.mxu0 0.0
        %668 = vmatpush1.msra.mxu0 0.0
        %669 = vmatprep.subr.mxu0 0.0
        %670 = vmatpush1.msra.mxu0 0.0
        %671 = vmatprep.subr.mxu0 0.0
        %672 = vmatpush1.msra.mxu0 0.0
        %673 = vmatprep.subr.mxu0 0.0
        %674 = vmatpush1.msra.mxu0 0.0
        %675 = vmatprep.subr.mxu0 0.0
        %676 = vmatpush1.msra.mxu0 0.0
        %677 = vmatprep.subr.mxu0 0.0
        %678 = vmatpush1.msra.mxu0 0.0
        %679 = vmatprep.subr.mxu0 0.0
        %680 = vmatpush1.msra.mxu0 0.0
        %681 = vmatprep.subr.mxu0 0.0
        %682 = vmatpush1.msra.mxu0 0.0
        %683 = vmatprep.subr.mxu0 0.0
        %684 = vmatpush1.msra.mxu0 0.0
        %685 = vmatprep.subr.mxu0 0.0
        %686 = vmatpush1.msra.mxu0 0.0
        %687 = vmatprep.subr.mxu0 0.0
        %688 = vmatpush1.msra.mxu0 0.0
        %689 = vmatprep.subr.mxu0 0.0
        %690 = vmatpush1.msra.mxu0 0.0
        %691 = vmatprep.subr.mxu0 0.0
        %692 = vmatpush1.msra.mxu0 0.0
        %693 = vmatprep.subr.mxu0 0.0
        %694 = vmatpush1.msra.mxu0 0.0
        %695 = vmatprep.subr.mxu0 0.0
        %696 = vmatpush1.msra.mxu0 0.0
        %697 = vmatprep.subr.mxu0 0.0
        %698 = vmatpush1.msra.mxu0 0.0
        %699 = vmatprep.subr.mxu0 0.0
        %700 = vmatpush1.msra.mxu0 0.0
        %701 = vmatprep.subr.mxu0 0.0
        %702 = vmatpush1.msra.mxu0 0.0
        %703 = vmatprep.subr.mxu0 0.0
        %704 = vmatpush1.msra.mxu0 0.0
        %705 = vmatprep.subr.mxu0 0.0
        %706 = vmatpush1.msra.mxu0 0.0
        %707 = vmatprep.subr.mxu0 0.0
        %708 = vmatpush1.msra.mxu0 0.0
        %709 = vmatprep.subr.mxu0 0.0
        %710 = vmatpush1.msra.mxu0 0.0
        %711 = vmatprep.subr.mxu0 0.0
        %712 = vmatpush1.msra.mxu0 0.0
        %713 = vmatprep.subr.mxu0 0.0
        %714 = vmatpush1.msra.mxu0 0.0
        %715 = vmatprep.subr.mxu0 0.0
        %716 = vmatpush1.msra.mxu0 0.0
        %717 = vmatprep.subr.mxu0 0.0
        %718 = vmatpush1.msra.mxu0 0.0
        %719 = vmatprep.subr.mxu0 0.0
        %720 = vmatpush1.msra.mxu0 0.0
        %721 = vmatprep.mubr.f32.mxu0 0.0
        %722 = vmatmul.mubr.f32.gmra.mrb[0].mxu0 %v642
        %v723 = vpop.f32.mrb[0].mxu0
        %v724 = vadd.f32 0.0, %v723
        %v725 = vpop.f32.mrb[0].mxu0
        %726 = vmatprep.mubr.f32.mxu0 0.0
        %727 = vmatmul.mubr.f32.gmra.mrb[0].mxu0 %v645
        %v728 = vpop.f32.mrb[0].mxu0
        %v729 = vadd.f32 0.0, %v728
        %v730 = vpop.f32.mrb[0].mxu0
        %731 = vmatprep.mubr.f32.mxu0 0.0
        %732 = vmatmul.mubr.f32.gmra.mrb[0].mxu0 %v648
        %v733 = vpop.f32.mrb[0].mxu0
        %v734 = vadd.f32 0.0, %v733
        %v735 = vpop.f32.mrb[0].mxu0
        %736 = vmatprep.mubr.f32.mxu0 0.0
        %737 = vmatmul.mubr.f32.gmra.mrb[0].mxu0 %v651
        %v738 = vpop.f32.mrb[0].mxu0
        %v739 = vadd.f32 0.0, %v738
        %v740 = vpop.f32.mrb[0].mxu0
        %741 = vdwg.mxu0
        %v742 = vmax.f32 %v724, 0.0
        %v743 = vmax.f32 %v729, 0.0
        %v744 = vmax.f32 %v734, 0.0
        %v745 = vmax.f32 %v739, 0.0
        %v746 = vld [vmem:[%s7] sm:$0xff]
        %v747 = vld [vmem:[%s7 + $0x8] sm:$0xff]
        %v748 = vld [vmem:[%s7 + $0x10] sm:$0xff]
        %v749 = vld [vmem:[%s7 + $0x18] sm:$0xff]
        %v750 = vld [vmem:[%s7 + $0x20] sm:$0xff]
        %v751 = vld [vmem:[%s7 + $0x28] sm:$0xff]
        %v752 = vld [vmem:[%s7 + $0x30] sm:$0xff]
        %v753 = vld [vmem:[%s7 + $0x38] sm:$0xff]
        %v754 = vld [vmem:[%s7 + $0x40] sm:$0xff]
        %v755 = vld [vmem:[%s7 + $0x48] sm:$0xff]
        %v756 = vld [vmem:[%s7 + $0x50] sm:$0xff]
        %v757 = vld [vmem:[%s7 + $0x58] sm:$0xff]
        %v758 = vld [vmem:[%s7 + $0x60] sm:$0x1]
        %v759 = vld [vmem:[%s7 + $0x68] sm:$0x1]
        %vm760 = vcmask 400384
        %v762 = vsel %vm760, %v742, 0
        %v765 = vsel %vm760, %v743, 0
        %v768 = vsel %vm760, %v744, 0
        %v771 = vsel %vm760, %v745, 0
        %v774 = vsel %vm653, %v758, 0
        %v777 = vsel %vm653, %v759, 0
        %779 = vmatprep.subr.mxu0 %v747
        %780 = vmatpush1.msra.mxu0 %v746
        %781 = vmatprep.subr.mxu0 %v749
        %782 = vmatpush1.msra.mxu0 %v748
        %783 = vmatprep.subr.mxu0 %v751
        %784 = vmatpush1.msra.mxu0 %v750
        %785 = vmatprep.subr.mxu0 %v753
        %786 = vmatpush1.msra.mxu0 %v752
        %787 = vmatprep.subr.mxu0 %v755
        %788 = vmatpush1.msra.mxu0 %v754
        %789 = vmatprep.subr.mxu0 %v757
        %790 = vmatpush1.msra.mxu0 %v756
        %791 = vmatprep.subr.mxu0 %v777
        %792 = vmatpush1.msra.mxu0 %v774
        %793 = vmatprep.subr.mxu0 0.0
        %794 = vmatpush1.msra.mxu0 0.0
        %795 = vmatprep.subr.mxu0 0.0
        %796 = vmatpush1.msra.mxu0 0.0
        %797 = vmatprep.subr.mxu0 0.0
        %798 = vmatpush1.msra.mxu0 0.0
        %799 = vmatprep.subr.mxu0 0.0
        %800 = vmatpush1.msra.mxu0 0.0
        %801 = vmatprep.subr.mxu0 0.0
        %802 = vmatpush1.msra.mxu0 0.0
        %803 = vmatprep.subr.mxu0 0.0
        %804 = vmatpush1.msra.mxu0 0.0
        %805 = vmatprep.subr.mxu0 0.0
        %806 = vmatpush1.msra.mxu0 0.0
        %807 = vmatprep.subr.mxu0 0.0
        %808 = vmatpush1.msra.mxu0 0.0
        %809 = vmatprep.subr.mxu0 0.0
        %810 = vmatpush1.msra.mxu0 0.0
        %811 = vmatprep.subr.mxu0 0.0
        %812 = vmatpush1.msra.mxu0 0.0
        %813 = vmatprep.subr.mxu0 0.0
        %814 = vmatpush1.msra.mxu0 0.0
        %815 = vmatprep.subr.mxu0 0.0
        %816 = vmatpush1.msra.mxu0 0.0
        %817 = vmatprep.subr.mxu0 0.0
        %818 = vmatpush1.msra.mxu0 0.0
        %819 = vmatprep.subr.mxu0 0.0
        %820 = vmatpush1.msra.mxu0 0.0
        %821 = vmatprep.subr.mxu0 0.0
        %822 = vmatpush1.msra.mxu0 0.0
        %823 = vmatprep.subr.mxu0 0.0
        %824 = vmatpush1.msra.mxu0 0.0
        %825 = vmatprep.subr.mxu0 0.0
        %826 = vmatpush1.msra.mxu0 0.0
        %827 = vmatprep.subr.mxu0 0.0
        %828 = vmatpush1.msra.mxu0 0.0
        %829 = vmatprep.subr.mxu0 0.0
        %830 = vmatpush1.msra.mxu0 0.0
        %831 = vmatprep.subr.mxu0 0.0
        %832 = vmatpush1.msra.mxu0 0.0
        %833 = vmatprep.subr.mxu0 0.0
        %834 = vmatpush1.msra.mxu0 0.0
        %835 = vmatprep.subr.mxu0 0.0
        %836 = vmatpush1.msra.mxu0 0.0
        %837 = vmatprep.subr.mxu0 0.0
        %838 = vmatpush1.msra.mxu0 0.0
        %839 = vmatprep.subr.mxu0 0.0
        %840 = vmatpush1.msra.mxu0 0.0
        %841 = vmatprep.subr.mxu0 0.0
        %842 = vmatpush1.msra.mxu0 0.0
        %843 = vmatprep.mubr.f32.mxu0 0.0
        %844 = vmatmul.mubr.f32.gmra.mrb[0].mxu0 %v762
        %v845 = vpop.f32.mrb[0].mxu0
        %v846 = vadd.f32 0.0, %v845
        %v847 = vpop.f32.mrb[0].mxu0
        %v848 = vadd.f32 0.0, %v847
        %849 = vmatprep.mubr.f32.mxu0 0.0
        %850 = vmatmul.mubr.f32.gmra.mrb[0].mxu0 %v765
        %v851 = vpop.f32.mrb[0].mxu0
        %v852 = vadd.f32 0.0, %v851
        %v853 = vpop.f32.mrb[0].mxu0
        %v854 = vadd.f32 0.0, %v853
        %855 = vmatprep.mubr.f32.mxu0 0.0
        %856 = vmatmul.mubr.f32.gmra.mrb[0].mxu0 %v768
        %v857 = vpop.f32.mrb[0].mxu0
        %v858 = vadd.f32 0.0, %v857
        %v859 = vpop.f32.mrb[0].mxu0
        %v860 = vadd.f32 0.0, %v859
        %861 = vmatprep.mubr.f32.mxu0 0.0
        %862 = vmatmul.mubr.f32.gmra.mrb[0].mxu0 %v771
        %v863 = vpop.f32.mrb[0].mxu0
        %v864 = vadd.f32 0.0, %v863
        %v865 = vpop.f32.mrb[0].mxu0
        %v866 = vadd.f32 0.0, %v865
        %867 = vdwg.mxu0
        %v868 = vld [vmem:[%s4] sm:$0xff]
        %v869 = vld [vmem:[%s4 + $0x8] sm:$0xff]
        %v870 = vld [vmem:[%s4 + $0x10] sm:$0x1]
        %v871 = vld [vmem:[%s4 + $0x18] sm:$0x1]
        %v873 = vsel %vm653, %v870, 0
        %v876 = vsel %vm653, %v871, 0
        %878 = vmatprep.subr.mxu0 %v869
        %879 = vmatpush1.msra.mxu0 %v868
        %880 = vmatprep.subr.mxu0 %v876
        %881 = vmatpush1.msra.mxu0 %v873
        %882 = vmatprep.subr.mxu0 0.0
        %883 = vmatpush1.msra.mxu0 0.0
        %884 = vmatprep.subr.mxu0 0.0
        %885 = vmatpush1.msra.mxu0 0.0
        %886 = vmatprep.subr.mxu0 0.0
        %887 = vmatpush1.msra.mxu0 0.0
        %888 = vmatprep.subr.mxu0 0.0
        %889 = vmatpush1.msra.mxu0 0.0
        %890 = vmatprep.subr.mxu0 0.0
        %891 = vmatpush1.msra.mxu0 0.0
        %892 = vmatprep.subr.mxu0 0.0
        %893 = vmatpush1.msra.mxu0 0.0
        %894 = vmatprep.subr.mxu0 0.0
        %895 = vmatpush1.msra.mxu0 0.0
        %896 = vmatprep.subr.mxu0 0.0
        %897 = vmatpush1.msra.mxu0 0.0
        %898 = vmatprep.subr.mxu0 0.0
        %899 = vmatpush1.msra.mxu0 0.0
        %900 = vmatprep.subr.mxu0 0.0
        %901 = vmatpush1.msra.mxu0 0.0
        %902 = vmatprep.subr.mxu0 0.0
        %903 = vmatpush1.msra.mxu0 0.0
        %904 = vmatprep.subr.mxu0 0.0
        %905 = vmatpush1.msra.mxu0 0.0
        %906 = vmatprep.subr.mxu0 0.0
        %907 = vmatpush1.msra.mxu0 0.0
        %908 = vmatprep.subr.mxu0 0.0
        %909 = vmatpush1.msra.mxu0 0.0
        %910 = vmatprep.subr.mxu0 0.0
        %911 = vmatpush1.msra.mxu0 0.0
        %912 = vmatprep.subr.mxu0 0.0
        %913 = vmatpush1.msra.mxu0 0.0
        %914 = vmatprep.subr.mxu0 0.0
        %915 = vmatpush1.msra.mxu0 0.0
        %916 = vmatprep.subr.mxu0 0.0
        %917 = vmatpush1.msra.mxu0 0.0
        %918 = vmatprep.subr.mxu0 0.0
        %919 = vmatpush1.msra.mxu0 0.0
        %920 = vmatprep.subr.mxu0 0.0
        %921 = vmatpush1.msra.mxu0 0.0
        %922 = vmatprep.subr.mxu0 0.0
        %923 = vmatpush1.msra.mxu0 0.0
        %924 = vmatprep.subr.mxu0 0.0
        %925 = vmatpush1.msra.mxu0 0.0
        %926 = vmatprep.subr.mxu0 0.0
        %927 = vmatpush1.msra.mxu0 0.0
        %928 = vmatprep.subr.mxu0 0.0
        %929 = vmatpush1.msra.mxu0 0.0
        %930 = vmatprep.subr.mxu0 0.0
        %931 = vmatpush1.msra.mxu0 0.0
        %932 = vmatprep.subr.mxu0 0.0
        %933 = vmatpush1.msra.mxu0 0.0
        %934 = vmatprep.subr.mxu0 0.0
        %935 = vmatpush1.msra.mxu0 0.0
        %936 = vmatprep.subr.mxu0 0.0
        %937 = vmatpush1.msra.mxu0 0.0
        %938 = vmatprep.subr.mxu0 0.0
        %939 = vmatpush1.msra.mxu0 0.0
        %940 = vmatprep.subr.mxu0 0.0
        %941 = vmatpush1.msra.mxu0 0.0
        %942 = vmatprep.mubr.f32.mxu0 0.0
        %943 = vmatmul.mubr.f32.gmra.mrb[0].mxu0 %v642
        %v944 = vpop.f32.mrb[0].mxu0
        %v945 = vadd.f32 0.0, %v944
        %v946 = vpop.f32.mrb[0].mxu0
        %v947 = vadd.f32 0.0, %v946
        %948 = vmatprep.mubr.f32.mxu0 0.0
        %949 = vmatmul.mubr.f32.gmra.mrb[0].mxu0 %v645
        %v950 = vpop.f32.mrb[0].mxu0
        %v951 = vadd.f32 0.0, %v950
        %v952 = vpop.f32.mrb[0].mxu0
        %v953 = vadd.f32 0.0, %v952
        %954 = vmatprep.mubr.f32.mxu0 0.0
        %955 = vmatmul.mubr.f32.gmra.mrb[0].mxu0 %v648
        %v956 = vpop.f32.mrb[0].mxu0
        %v957 = vadd.f32 0.0, %v956
        %v958 = vpop.f32.mrb[0].mxu0
        %v959 = vadd.f32 0.0, %v958
        %960 = vmatprep.mubr.f32.mxu0 0.0
        %961 = vmatmul.mubr.f32.gmra.mrb[0].mxu0 %v651
        %v962 = vpop.f32.mrb[0].mxu0
        %v963 = vadd.f32 0.0, %v962
        %v964 = vpop.f32.mrb[0].mxu0
        %v965 = vadd.f32 0.0, %v964
        %966 = vdwg.mxu0
        %v967 = vmul.f32 %v945, %v846
        %v968 = vmul.f32 %v947, %v848
        %v969 = vmul.f32 %v951, %v852
        %v970 = vmul.f32 %v953, %v854
        %v971 = vmul.f32 %v957, %v858
        %v972 = vmul.f32 %v959, %v860
        %v973 = vmul.f32 %v963, %v864
        %v974 = vmul.f32 %v965, %v866
        %v975 = vadd.f32 %v967, %v968
        %v976 = vadd.f32 %v969, %v970
        %v977 = vadd.f32 %v971, %v972
        %v978 = vadd.f32 %v973, %v974
        %983 = vrot.lane.b32.xlu0 %v975, 64
        %v984 = vpop.permute.xlu0 %983
        %985 = vrot.lane.b32.xlu0 %v976, 64
        %v986 = vpop.permute.xlu0 %985
        %987 = vrot.lane.b32.xlu0 %v977, 64
        %v988 = vpop.permute.xlu0 %987
        %989 = vrot.lane.b32.xlu0 %v978, 64
        %v990 = vpop.permute.xlu0 %989
        %v995 = vadd.f32 %v975, %v984
        %v996 = vadd.f32 %v976, %v986
        %v997 = vadd.f32 %v977, %v988
        %v998 = vadd.f32 %v978, %v990
        %1003 = vrot.lane.b32.xlu0 %v995, 96
        %v1004 = vpop.permute.xlu0 %1003
        %1005 = vrot.lane.b32.xlu0 %v996, 96
        %v1006 = vpop.permute.xlu0 %1005
        %1007 = vrot.lane.b32.xlu0 %v997, 96
        %v1008 = vpop.permute.xlu0 %1007
        %1009 = vrot.lane.b32.xlu0 %v998, 96
        %v1010 = vpop.permute.xlu0 %1009
        %v1015 = vadd.f32 %v995, %v1004
        %v1016 = vadd.f32 %v996, %v1006
        %v1017 = vadd.f32 %v997, %v1008
        %v1018 = vadd.f32 %v998, %v1010
        %v1019 = vld [vmem:[%s612] sm:$0xff]
        %v1020 = vld [vmem:[%s612 + $0x8] sm:$0xff]
        %v1021 = vld [vmem:[%s9] sm:$0xff]
        %v1022 = vld [vmem:[%s9 + $0x8] sm:$0x1]
        %v1024 = vsel %vm640, %v1019, 0
        %v1027 = vsel %vm640, %v1020, 0
        %v1030 = vsel %vm653, %v1022, 0
        %1032 = vmatprep.subr.mxu0 0.0
        %1033 = vmatpush1.msra.mxu0 %v1021
        %1034 = vmatprep.subr.mxu0 0.0
        %1035 = vmatpush1.msra.mxu0 %v1030
        %1036 = vmatprep.subr.mxu0 0.0
        %1037 = vmatpush1.msra.mxu0 0.0
        %1038 = vmatprep.subr.mxu0 0.0
        %1039 = vmatpush1.msra.mxu0 0.0
        %1040 = vmatprep.subr.mxu0 0.0
        %1041 = vmatpush1.msra.mxu0 0.0
        %1042 = vmatprep.subr.mxu0 0.0
        %1043 = vmatpush1.msra.mxu0 0.0
        %1044 = vmatprep.subr.mxu0 0.0
        %1045 = vmatpush1.msra.mxu0 0.0
        %1046 = vmatprep.subr.mxu0 0.0
        %1047 = vmatpush1.msra.mxu0 0.0
        %1048 = vmatprep.subr.mxu0 0.0
        %1049 = vmatpush1.msra.mxu0 0.0
        %1050 = vmatprep.subr.mxu0 0.0
        %1051 = vmatpush1.msra.mxu0 0.0
        %1052 = vmatprep.subr.mxu0 0.0
        %1053 = vmatpush1.msra.mxu0 0.0
        %1054 = vmatprep.subr.mxu0 0.0
        %1055 = vmatpush1.msra.mxu0 0.0
        %1056 = vmatprep.subr.mxu0 0.0
        %1057 = vmatpush1.msra.mxu0 0.0
        %1058 = vmatprep.subr.mxu0 0.0
        %1059 = vmatpush1.msra.mxu0 0.0
        %1060 = vmatprep.subr.mxu0 0.0
        %1061 = vmatpush1.msra.mxu0 0.0
        %1062 = vmatprep.subr.mxu0 0.0
        %1063 = vmatpush1.msra.mxu0 0.0
        %1064 = vmatprep.subr.mxu0 0.0
        %1065 = vmatpush1.msra.mxu0 0.0
        %1066 = vmatprep.subr.mxu0 0.0
        %1067 = vmatpush1.msra.mxu0 0.0
        %1068 = vmatprep.subr.mxu0 0.0
        %1069 = vmatpush1.msra.mxu0 0.0
        %1070 = vmatprep.subr.mxu0 0.0
        %1071 = vmatpush1.msra.mxu0 0.0
        %1072 = vmatprep.subr.mxu0 0.0
        %1073 = vmatpush1.msra.mxu0 0.0
        %1074 = vmatprep.subr.mxu0 0.0
        %1075 = vmatpush1.msra.mxu0 0.0
        %1076 = vmatprep.subr.mxu0 0.0
        %1077 = vmatpush1.msra.mxu0 0.0
        %1078 = vmatprep.subr.mxu0 0.0
        %1079 = vmatpush1.msra.mxu0 0.0
        %1080 = vmatprep.subr.mxu0 0.0
        %1081 = vmatpush1.msra.mxu0 0.0
        %1082 = vmatprep.subr.mxu0 0.0
        %1083 = vmatpush1.msra.mxu0 0.0
        %1084 = vmatprep.subr.mxu0 0.0
        %1085 = vmatpush1.msra.mxu0 0.0
        %1086 = vmatprep.subr.mxu0 0.0
        %1087 = vmatpush1.msra.mxu0 0.0
        %1088 = vmatprep.subr.mxu0 0.0
        %1089 = vmatpush1.msra.mxu0 0.0
        %1090 = vmatprep.subr.mxu0 0.0
        %1091 = vmatpush1.msra.mxu0 0.0
        %1092 = vmatprep.subr.mxu0 0.0
        %1093 = vmatpush1.msra.mxu0 0.0
        %1094 = vmatprep.subr.mxu0 0.0
        %1095 = vmatpush1.msra.mxu0 0.0
        %1096 = vmatprep.mubr.f32.mxu0 0.0
        %1097 = vmatmul.mubr.f32.gmra.mrb[0].mxu0 %v1024
        %v1098 = vpop.f32.mrb[0].mxu0
        %v1099 = vadd.f32 0.0, %v1098
        %v1100 = vpop.f32.mrb[0].mxu0
        %1101 = vmatprep.mubr.f32.mxu0 0.0
        %1102 = vmatmul.mubr.f32.gmra.mrb[0].mxu0 %v1027
        %v1103 = vpop.f32.mrb[0].mxu0
        %v1104 = vadd.f32 0.0, %v1103
        %v1105 = vpop.f32.mrb[0].mxu0
        %1106 = vdwg.mxu0
        %v1107 = vmax.f32 %v1099, 0.0
        %v1108 = vmax.f32 %v1104, 0.0
        %v1109 = vld [vmem:[%s10] sm:$0xff]
        %v1110 = vld [vmem:[%s10 + $0x8] sm:$0xff]
        %v1111 = vld [vmem:[%s10 + $0x10] sm:$0xff]
        %v1112 = vld [vmem:[%s10 + $0x18] sm:$0xff]
        %v1113 = vld [vmem:[%s10 + $0x20] sm:$0x1]
        %v1114 = vld [vmem:[%s10 + $0x28] sm:$0x1]
        %vm1115 = vcmask 138240
        %v1117 = vsel %vm1115, %v1107, 0
        %v1120 = vsel %vm1115, %v1108, 0
        %v1123 = vsel %vm653, %v1113, 0
        %v1126 = vsel %vm653, %v1114, 0
        %1128 = vmatprep.subr.mxu0 %v1110
        %1129 = vmatpush1.msra.mxu0 %v1109
        %1130 = vmatprep.subr.mxu0 %v1112
        %1131 = vmatpush1.msra.mxu0 %v1111
        %1132 = vmatprep.subr.mxu0 %v1126
        %1133 = vmatpush1.msra.mxu0 %v1123
        %1134 = vmatprep.subr.mxu0 0.0
        %1135 = vmatpush1.msra.mxu0 0.0
        %1136 = vmatprep.subr.mxu0 0.0
        %1137 = vmatpush1.msra.mxu0 0.0
        %1138 = vmatprep.subr.mxu0 0.0
        %1139 = vmatpush1.msra.mxu0 0.0
        %1140 = vmatprep.subr.mxu0 0.0
        %1141 = vmatpush1.msra.mxu0 0.0
        %1142 = vmatprep.subr.mxu0 0.0
        %1143 = vmatpush1.msra.mxu0 0.0
        %1144 = vmatprep.subr.mxu0 0.0
        %1145 = vmatpush1.msra.mxu0 0.0
        %1146 = vmatprep.subr.mxu0 0.0
        %1147 = vmatpush1.msra.mxu0 0.0
        %1148 = vmatprep.subr.mxu0 0.0
        %1149 = vmatpush1.msra.mxu0 0.0
        %1150 = vmatprep.subr.mxu0 0.0
        %1151 = vmatpush1.msra.mxu0 0.0
        %1152 = vmatprep.subr.mxu0 0.0
        %1153 = vmatpush1.msra.mxu0 0.0
        %1154 = vmatprep.subr.mxu0 0.0
        %1155 = vmatpush1.msra.mxu0 0.0
        %1156 = vmatprep.subr.mxu0 0.0
        %1157 = vmatpush1.msra.mxu0 0.0
        %1158 = vmatprep.subr.mxu0 0.0
        %1159 = vmatpush1.msra.mxu0 0.0
        %1160 = vmatprep.subr.mxu0 0.0
        %1161 = vmatpush1.msra.mxu0 0.0
        %1162 = vmatprep.subr.mxu0 0.0
        %1163 = vmatpush1.msra.mxu0 0.0
        %1164 = vmatprep.subr.mxu0 0.0
        %1165 = vmatpush1.msra.mxu0 0.0
        %1166 = vmatprep.subr.mxu0 0.0
        %1167 = vmatpush1.msra.mxu0 0.0
        %1168 = vmatprep.subr.mxu0 0.0
        %1169 = vmatpush1.msra.mxu0 0.0
        %1170 = vmatprep.subr.mxu0 0.0
        %1171 = vmatpush1.msra.mxu0 0.0
        %1172 = vmatprep.subr.mxu0 0.0
        %1173 = vmatpush1.msra.mxu0 0.0
        %1174 = vmatprep.subr.mxu0 0.0
        %1175 = vmatpush1.msra.mxu0 0.0
        %1176 = vmatprep.subr.mxu0 0.0
        %1177 = vmatpush1.msra.mxu0 0.0
        %1178 = vmatprep.subr.mxu0 0.0
        %1179 = vmatpush1.msra.mxu0 0.0
        %1180 = vmatprep.subr.mxu0 0.0
        %1181 = vmatpush1.msra.mxu0 0.0
        %1182 = vmatprep.subr.mxu0 0.0
        %1183 = vmatpush1.msra.mxu0 0.0
        %1184 = vmatprep.subr.mxu0 0.0
        %1185 = vmatpush1.msra.mxu0 0.0
        %1186 = vmatprep.subr.mxu0 0.0
        %1187 = vmatpush1.msra.mxu0 0.0
        %1188 = vmatprep.subr.mxu0 0.0
        %1189 = vmatpush1.msra.mxu0 0.0
        %1190 = vmatprep.subr.mxu0 0.0
        %1191 = vmatpush1.msra.mxu0 0.0
        %1192 = vmatprep.mubr.f32.mxu0 0.0
        %1193 = vmatmul.mubr.f32.gmra.mrb[0].mxu0 %v1117
        %v1194 = vpop.f32.mrb[0].mxu0
        %v1195 = vadd.f32 0.0, %v1194
        %v1196 = vpop.f32.mrb[0].mxu0
        %v1197 = vadd.f32 0.0, %v1196
        %1198 = vmatprep.mubr.f32.mxu0 0.0
        %1199 = vmatmul.mubr.f32.gmra.mrb[0].mxu0 %v1120
        %v1200 = vpop.f32.mrb[0].mxu0
        %v1201 = vadd.f32 0.0, %v1200
        %v1202 = vpop.f32.mrb[0].mxu0
        %v1203 = vadd.f32 0.0, %v1202
        %1204 = vdwg.mxu0
        %1205 = vmatprep.subr.mxu0 %v869
        %1206 = vmatpush1.msra.mxu0 %v868
        %1207 = vmatprep.subr.mxu0 %v876
        %1208 = vmatpush1.msra.mxu0 %v873
        %1209 = vmatprep.subr.mxu0 0.0
        %1210 = vmatpush1.msra.mxu0 0.0
        %1211 = vmatprep.subr.mxu0 0.0
        %1212 = vmatpush1.msra.mxu0 0.0
        %1213 = vmatprep.subr.mxu0 0.0
        %1214 = vmatpush1.msra.mxu0 0.0
        %1215 = vmatprep.subr.mxu0 0.0
        %1216 = vmatpush1.msra.mxu0 0.0
        %1217 = vmatprep.subr.mxu0 0.0
        %1218 = vmatpush1.msra.mxu0 0.0
        %1219 = vmatprep.subr.mxu0 0.0
        %1220 = vmatpush1.msra.mxu0 0.0
        %1221 = vmatprep.subr.mxu0 0.0
        %1222 = vmatpush1.msra.mxu0 0.0
        %1223 = vmatprep.subr.mxu0 0.0
        %1224 = vmatpush1.msra.mxu0 0.0
        %1225 = vmatprep.subr.mxu0 0.0
        %1226 = vmatpush1.msra.mxu0 0.0
        %1227 = vmatprep.subr.mxu0 0.0
        %1228 = vmatpush1.msra.mxu0 0.0
        %1229 = vmatprep.subr.mxu0 0.0
        %1230 = vmatpush1.msra.mxu0 0.0
        %1231 = vmatprep.subr.mxu0 0.0
        %1232 = vmatpush1.msra.mxu0 0.0
        %1233 = vmatprep.subr.mxu0 0.0
        %1234 = vmatpush1.msra.mxu0 0.0
        %1235 = vmatprep.subr.mxu0 0.0
        %1236 = vmatpush1.msra.mxu0 0.0
        %1237 = vmatprep.subr.mxu0 0.0
        %1238 = vmatpush1.msra.mxu0 0.0
        %1239 = vmatprep.subr.mxu0 0.0
        %1240 = vmatpush1.msra.mxu0 0.0
        %1241 = vmatprep.subr.mxu0 0.0
        %1242 = vmatpush1.msra.mxu0 0.0
        %1243 = vmatprep.subr.mxu0 0.0
        %1244 = vmatpush1.msra.mxu0 0.0
        %1245 = vmatprep.subr.mxu0 0.0
        %1246 = vmatpush1.msra.mxu0 0.0
        %1247 = vmatprep.subr.mxu0 0.0
        %1248 = vmatpush1.msra.mxu0 0.0
        %1249 = vmatprep.subr.mxu0 0.0
        %1250 = vmatpush1.msra.mxu0 0.0
        %1251 = vmatprep.subr.mxu0 0.0
        %1252 = vmatpush1.msra.mxu0 0.0
        %1253 = vmatprep.subr.mxu0 0.0
        %1254 = vmatpush1.msra.mxu0 0.0
        %1255 = vmatprep.subr.mxu0 0.0
        %1256 = vmatpush1.msra.mxu0 0.0
        %1257 = vmatprep.subr.mxu0 0.0
        %1258 = vmatpush1.msra.mxu0 0.0
        %1259 = vmatprep.subr.mxu0 0.0
        %1260 = vmatpush1.msra.mxu0 0.0
        %1261 = vmatprep.subr.mxu0 0.0
        %1262 = vmatpush1.msra.mxu0 0.0
        %1263 = vmatprep.subr.mxu0 0.0
        %1264 = vmatpush1.msra.mxu0 0.0
        %1265 = vmatprep.subr.mxu0 0.0
        %1266 = vmatpush1.msra.mxu0 0.0
        %1267 = vmatprep.subr.mxu0 0.0
        %1268 = vmatpush1.msra.mxu0 0.0
        %1269 = vmatprep.mubr.f32.mxu0 0.0
        %1270 = vmatmul.mubr.f32.gmra.mrb[0].mxu0 %v1024
        %v1271 = vpop.f32.mrb[0].mxu0
        %v1272 = vadd.f32 0.0, %v1271
        %v1273 = vpop.f32.mrb[0].mxu0
        %v1274 = vadd.f32 0.0, %v1273
        %1275 = vmatprep.mubr.f32.mxu0 0.0
        %1276 = vmatmul.mubr.f32.gmra.mrb[0].mxu0 %v1027
        %v1277 = vpop.f32.mrb[0].mxu0
        %v1278 = vadd.f32 0.0, %v1277
        %v1279 = vpop.f32.mrb[0].mxu0
        %v1280 = vadd.f32 0.0, %v1279
        %1281 = vdwg.mxu0
        %v1282 = vmul.f32 %v1272, %v1195
        %v1283 = vmul.f32 %v1274, %v1197
        %v1284 = vmul.f32 %v1278, %v1201
        %v1285 = vmul.f32 %v1280, %v1203
        %v1286 = vadd.f32 %v1282, %v1283
        %v1287 = vadd.f32 %v1284, %v1285
        %1290 = vrot.lane.b32.xlu0 %v1286, 64
        %v1291 = vpop.permute.xlu0 %1290
        %1292 = vrot.lane.b32.xlu0 %v1287, 64
        %v1293 = vpop.permute.xlu0 %1292
        %v1296 = vadd.f32 %v1286, %v1291
        %v1297 = vadd.f32 %v1287, %v1293
        %1300 = vrot.lane.b32.xlu0 %v1296, 96
        %v1301 = vpop.permute.xlu0 %1300
        %1302 = vrot.lane.b32.xlu0 %v1297, 96
        %v1303 = vpop.permute.xlu0 %1302
        %v1306 = vadd.f32 %v1296, %v1301
        %v1307 = vadd.f32 %v1297, %v1303
        %v1308 = vadd.f32 %v1015, %v1016
        %v1309 = vadd.f32 %v1308, %v1017
        %v1310 = vadd.f32 %v1309, %v1018
        %v1311 = vadd.f32 %v1310, %v1306
        %v1312 = vadd.f32 %v1311, %v1307
        %vm1313 = vcmask 195584
        %v1315 = vsel %vm1313, %v630, 0
        %1317 = vmatprep.subr.mxu0 0.0
        %1318 = vmatpush1.msra.mxu0 %v631
        %1319 = vmatprep.subr.mxu0 0.0
        %1320 = vmatpush1.msra.mxu0 %v632
        %1321 = vmatprep.subr.mxu0 0.0
        %1322 = vmatpush1.msra.mxu0 %v633
        %1323 = vmatprep.subr.mxu0 0.0
        %1324 = vmatpush1.msra.mxu0 0.0
        %1325 = vmatprep.subr.mxu0 0.0
        %1326 = vmatpush1.msra.mxu0 0.0
        %1327 = vmatprep.subr.mxu0 0.0
        %1328 = vmatpush1.msra.mxu0 0.0
        %1329 = vmatprep.subr.mxu0 0.0
        %1330 = vmatpush1.msra.mxu0 0.0
        %1331 = vmatprep.subr.mxu0 0.0
        %1332 = vmatpush1.msra.mxu0 0.0
        %1333 = vmatprep.subr.mxu0 0.0
        %1334 = vmatpush1.msra.mxu0 0.0
        %1335 = vmatprep.subr.mxu0 0.0
        %1336 = vmatpush1.msra.mxu0 0.0
        %1337 = vmatprep.subr.mxu0 0.0
        %1338 = vmatpush1.msra.mxu0 0.0
        %1339 = vmatprep.subr.mxu0 0.0
        %1340 = vmatpush1.msra.mxu0 0.0
        %1341 = vmatprep.subr.mxu0 0.0
        %1342 = vmatpush1.msra.mxu0 0.0
        %1343 = vmatprep.subr.mxu0 0.0
        %1344 = vmatpush1.msra.mxu0 0.0
        %1345 = vmatprep.subr.mxu0 0.0
        %1346 = vmatpush1.msra.mxu0 0.0
        %1347 = vmatprep.subr.mxu0 0.0
        %1348 = vmatpush1.msra.mxu0 0.0
        %1349 = vmatprep.subr.mxu0 0.0
        %1350 = vmatpush1.msra.mxu0 0.0
        %1351 = vmatprep.subr.mxu0 0.0
        %1352 = vmatpush1.msra.mxu0 0.0
        %1353 = vmatprep.subr.mxu0 0.0
        %1354 = vmatpush1.msra.mxu0 0.0
        %1355 = vmatprep.subr.mxu0 0.0
        %1356 = vmatpush1.msra.mxu0 0.0
        %1357 = vmatprep.subr.mxu0 0.0
        %1358 = vmatpush1.msra.mxu0 0.0
        %1359 = vmatprep.subr.mxu0 0.0
        %1360 = vmatpush1.msra.mxu0 0.0
        %1361 = vmatprep.subr.mxu0 0.0
        %1362 = vmatpush1.msra.mxu0 0.0
        %1363 = vmatprep.subr.mxu0 0.0
        %1364 = vmatpush1.msra.mxu0 0.0
        %1365 = vmatprep.subr.mxu0 0.0
        %1366 = vmatpush1.msra.mxu0 0.0
        %1367 = vmatprep.subr.mxu0 0.0
        %1368 = vmatpush1.msra.mxu0 0.0
        %1369 = vmatprep.subr.mxu0 0.0
        %1370 = vmatpush1.msra.mxu0 0.0
        %1371 = vmatprep.subr.mxu0 0.0
        %1372 = vmatpush1.msra.mxu0 0.0
        %1373 = vmatprep.subr.mxu0 0.0
        %1374 = vmatpush1.msra.mxu0 0.0
        %1375 = vmatprep.subr.mxu0 0.0
        %1376 = vmatpush1.msra.mxu0 0.0
        %1377 = vmatprep.subr.mxu0 0.0
        %1378 = vmatpush1.msra.mxu0 0.0
        %1379 = vmatprep.subr.mxu0 0.0
        %1380 = vmatpush1.msra.mxu0 0.0
        %1381 = vmatprep.mubr.f32.mxu0 0.0
        %1382 = vmatmul.mubr.f32.gmra.mrb[0].mxu0 %v1315
        %v1383 = vpop.f32.mrb[0].mxu0
        %v1384 = vadd.f32 %v1312, %v1383
        %v1385 = vpop.f32.mrb[0].mxu0
        %1386 = vdwg.mxu0
        %v1387 = vmax.f32 %v1384, 0.0
        %1389 = vrot.lane.b32.xlu0 %v629, 32
        %v1390 = vpop.permute.xlu0 %1389
        %vm1392 = vcmask 261120
        %v1393 = vsel %vm1392, %v1387, %v1390
        %v1394 = vld [vmem:[%s11] sm:$0xff]
        %v1395 = vld [vmem:[%s11 + $0x8] sm:$0xff]
        %v1396 = vld [vmem:[%s11 + $0x10] sm:$0xff]
        %v1397 = vld [vmem:[%s11 + $0x18] sm:$0xff]
        %v1398 = vld [vmem:[%s11 + $0x20] sm:$0xff]
        %v1399 = vld [vmem:[%s11 + $0x28] sm:$0xff]
        %v1400 = vld [vmem:[%s11 + $0x30] sm:$0xff]
        %v1401 = vld [vmem:[%s11 + $0x38] sm:$0xff]
        %v1402 = vld [vmem:[%s11 + $0x40] sm:$0xff]
        %v1403 = vld [vmem:[%s11 + $0x48] sm:$0xff]
        %v1404 = vld [vmem:[%s11 + $0x50] sm:$0xff]
        %v1405 = vld [vmem:[%s11 + $0x58] sm:$0xff]
        %v1406 = vld [vmem:[%s11 + $0x60] sm:$0xff]
        %v1407 = vld [vmem:[%s11 + $0x68] sm:$0xff]
        %v1408 = vld [vmem:[%s11 + $0x70] sm:$0xff]
        %v1409 = vld [vmem:[%s11 + $0x78] sm:$0xff]
        %v1410 = vld [vmem:[%s12] sm:$0x3]
        %v1412 = vlaneseq
        %v1413 = vshrl.u32 %v1412, 7
        %v1414 = vsub.s32 0, %v1413
        %v1415 = vrot.slane %v1410, %v1414
        %v1416 = vlaneseq
        %v1417 = vshrl.u32 %v1416, 7
        %v1418 = vsub.s32 1, %v1417
        %v1419 = vrot.slane %v1410, %v1418
        %vm1422 = vcmask 523264
        %v1424 = vsel %vm1422, %v1393, 0
        %1426 = vmatprep.subr.mxu0 %v1395
        %1427 = vmatpush1.msra.mxu0 %v1394
        %1428 = vmatprep.subr.mxu0 %v1397
        %1429 = vmatpush1.msra.mxu0 %v1396
        %1430 = vmatprep.subr.mxu0 %v1399
        %1431 = vmatpush1.msra.mxu0 %v1398
        %1432 = vmatprep.subr.mxu0 %v1401
        %1433 = vmatpush1.msra.mxu0 %v1400
        %1434 = vmatprep.subr.mxu0 %v1403
        %1435 = vmatpush1.msra.mxu0 %v1402
        %1436 = vmatprep.subr.mxu0 %v1405
        %1437 = vmatpush1.msra.mxu0 %v1404
        %1438 = vmatprep.subr.mxu0 %v1407
        %1439 = vmatpush1.msra.mxu0 %v1406
        %1440 = vmatprep.subr.mxu0 %v1409
        %1441 = vmatpush1.msra.mxu0 %v1408
        %1442 = vmatprep.subr.mxu0 0.0
        %1443 = vmatpush1.msra.mxu0 0.0
        %1444 = vmatprep.subr.mxu0 0.0
        %1445 = vmatpush1.msra.mxu0 0.0
        %1446 = vmatprep.subr.mxu0 0.0
        %1447 = vmatpush1.msra.mxu0 0.0
        %1448 = vmatprep.subr.mxu0 0.0
        %1449 = vmatpush1.msra.mxu0 0.0
        %1450 = vmatprep.subr.mxu0 0.0
        %1451 = vmatpush1.msra.mxu0 0.0
        %1452 = vmatprep.subr.mxu0 0.0
        %1453 = vmatpush1.msra.mxu0 0.0
        %1454 = vmatprep.subr.mxu0 0.0
        %1455 = vmatpush1.msra.mxu0 0.0
        %1456 = vmatprep.subr.mxu0 0.0
        %1457 = vmatpush1.msra.mxu0 0.0
        %1458 = vmatprep.subr.mxu0 0.0
        %1459 = vmatpush1.msra.mxu0 0.0
        %1460 = vmatprep.subr.mxu0 0.0
        %1461 = vmatpush1.msra.mxu0 0.0
        %1462 = vmatprep.subr.mxu0 0.0
        %1463 = vmatpush1.msra.mxu0 0.0
        %1464 = vmatprep.subr.mxu0 0.0
        %1465 = vmatpush1.msra.mxu0 0.0
        %1466 = vmatprep.subr.mxu0 0.0
        %1467 = vmatpush1.msra.mxu0 0.0
        %1468 = vmatprep.subr.mxu0 0.0
        %1469 = vmatpush1.msra.mxu0 0.0
        %1470 = vmatprep.subr.mxu0 0.0
        %1471 = vmatpush1.msra.mxu0 0.0
        %1472 = vmatprep.subr.mxu0 0.0
        %1473 = vmatpush1.msra.mxu0 0.0
        %1474 = vmatprep.subr.mxu0 0.0
        %1475 = vmatpush1.msra.mxu0 0.0
        %1476 = vmatprep.subr.mxu0 0.0
        %1477 = vmatpush1.msra.mxu0 0.0
        %1478 = vmatprep.subr.mxu0 0.0
        %1479 = vmatpush1.msra.mxu0 0.0
        %1480 = vmatprep.subr.mxu0 0.0
        %1481 = vmatpush1.msra.mxu0 0.0
        %1482 = vmatprep.subr.mxu0 0.0
        %1483 = vmatpush1.msra.mxu0 0.0
        %1484 = vmatprep.subr.mxu0 0.0
        %1485 = vmatpush1.msra.mxu0 0.0
        %1486 = vmatprep.subr.mxu0 0.0
        %1487 = vmatpush1.msra.mxu0 0.0
        %1488 = vmatprep.subr.mxu0 0.0
        %1489 = vmatpush1.msra.mxu0 0.0
        %1490 = vmatprep.mubr.f32.mxu0 0.0
        %1491 = vmatmul.mubr.f32.gmra.mrb[0].mxu0 %v1424
        %v1492 = vpop.f32.mrb[0].mxu0
        %v1493 = vadd.f32 %v1415, %v1492
        %v1494 = vpop.f32.mrb[0].mxu0
        %v1495 = vadd.f32 %v1419, %v1494
        %1496 = vdwg.mxu0
        %1498 = vrot.lane.b32.xlu0 %v1493, 32
        %v1499 = vpop.permute.xlu0 %1498
        %v1501 = vadd.f32 %v1493, %v1499
        %v1502 = vxor.u32 %v1501, 2147483648
        %v1503 = vmul.f32 %v1502, 1.442695
        %v1504 = vpow.pop %v1503
        %v1505 = vadd.f32 %v1504, 1.0
        %v1506 = vrcp.pop %v1505
        %v1507 = vmul.f32 1.0, %v1506
        %1509 = vrot.lane.b32.xlu0 %v1495, 32
        %v1510 = vpop.permute.xlu0 %1509
        %v1512 = vadd.f32 %v1493, %v1510
        %v1513 = vxor.u32 %v1512, 2147483648
        %v1514 = vmul.f32 %v1513, 1.442695
        %v1515 = vpow.pop %v1514
        %v1516 = vadd.f32 %v1515, 1.0
        %v1517 = vrcp.pop %v1516
        %v1518 = vmul.f32 1.0, %v1517
        %1519 = vrot.lane.b32.xlu0 %v1495, 96
        %v1520 = vpop.permute.xlu0 %1519
        %v1522 = vmul.f32 %v1507, %v1520
        %1524 = vrot.lane.b32.xlu0 %v1522, 64
        %v1525 = vpop.permute.xlu0 %1524
        %v1527 = vadd.f32 %v1493, %v1525
        %v1528 = vtanh.pop %v1527
        %v1529 = vsub.f32 1.0, %v1518
        %1531 = vrot.lane.b32.xlu0 %v1528, 96
        %v1532 = vpop.permute.xlu0 %1531
        %v1534 = vmul.f32 %v1529, %v1532
        %v1535 = vmul.f32 %v1518, %v1390
        %v1536 = vadd.f32 %v1534, %v1535
        %1538 = vrot.lane.b32.xlu0 %v1536, 96
        %v1539 = vpop.permute.xlu0 %1538
        %1541 = vst.msk [vmem:[%s587] sm:$0xff] %vm1392, %v1539
        %v1542 = vld [vmem:[%s13] sm:$0xff]
        %v1543 = vld [vmem:[%s13 + $0x8] sm:$0xff]
        %v1544 = vld [vmem:[%s13 + $0x10] sm:$0xff]
        %v1545 = vld [vmem:[%s13 + $0x18] sm:$0xff]
        %v1546 = vld [vmem:[%s12 + $0x1] sm:$0x3]
        %v1548 = vlaneseq
        %v1549 = vshrl.u32 %v1548, 7
        %v1550 = vsub.s32 0, %v1549
        %v1551 = vrot.slane %v1546, %v1550
        %v1552 = vlaneseq
        %v1553 = vshrl.u32 %v1552, 7
        %v1554 = vsub.s32 1, %v1553
        %v1555 = vrot.slane %v1546, %v1554
        %1556 = vrot.lane.b32.xlu0 %v1551, 64
        %v1557 = vpop.permute.xlu0 %1556
        %1558 = vrot.lane.b32.xlu0 %v1555, 64
        %v1559 = vpop.permute.xlu0 %1558
        %v1560 = vsel %vm1422, %v1557, %v1559
        %v1562 = vsel %vm1392, %v1539, 0
        %1564 = vmatprep.subr.mxu0 0.0
        %1565 = vmatpush1.msra.mxu0 %v1542
        %1566 = vmatprep.subr.mxu0 0.0
        %1567 = vmatpush1.msra.mxu0 %v1543
        %1568 = vmatprep.subr.mxu0 0.0
        %1569 = vmatpush1.msra.mxu0 %v1544
        %1570 = vmatprep.subr.mxu0 0.0
        %1571 = vmatpush1.msra.mxu0 %v1545
        %1572 = vmatprep.subr.mxu0 0.0
        %1573 = vmatpush1.msra.mxu0 0.0
        %1574 = vmatprep.subr.mxu0 0.0
        %1575 = vmatpush1.msra.mxu0 0.0
        %1576 = vmatprep.subr.mxu0 0.0
        %1577 = vmatpush1.msra.mxu0 0.0
        %1578 = vmatprep.subr.mxu0 0.0
        %1579 = vmatpush1.msra.mxu0 0.0
        %1580 = vmatprep.subr.mxu0 0.0
        %1581 = vmatpush1.msra.mxu0 0.0
        %1582 = vmatprep.subr.mxu0 0.0
        %1583 = vmatpush1.msra.mxu0 0.0
        %1584 = vmatprep.subr.mxu0 0.0
        %1585 = vmatpush1.msra.mxu0 0.0
        %1586 = vmatprep.subr.mxu0 0.0
        %1587 = vmatpush1.msra.mxu0 0.0
        %1588 = vmatprep.subr.mxu0 0.0
        %1589 = vmatpush1.msra.mxu0 0.0
        %1590 = vmatprep.subr.mxu0 0.0
        %1591 = vmatpush1.msra.mxu0 0.0
        %1592 = vmatprep.subr.mxu0 0.0
        %1593 = vmatpush1.msra.mxu0 0.0
        %1594 = vmatprep.subr.mxu0 0.0
        %1595 = vmatpush1.msra.mxu0 0.0
        %1596 = vmatprep.subr.mxu0 0.0
        %1597 = vmatpush1.msra.mxu0 0.0
        %1598 = vmatprep.subr.mxu0 0.0
        %1599 = vmatpush1.msra.mxu0 0.0
        %1600 = vmatprep.subr.mxu0 0.0
        %1601 = vmatpush1.msra.mxu0 0.0
        %1602 = vmatprep.subr.mxu0 0.0
        %1603 = vmatpush1.msra.mxu0 0.0
        %1604 = vmatprep.subr.mxu0 0.0
        %1605 = vmatpush1.msra.mxu0 0.0
        %1606 = vmatprep.subr.mxu0 0.0
        %1607 = vmatpush1.msra.mxu0 0.0
        %1608 = vmatprep.subr.mxu0 0.0
        %1609 = vmatpush1.msra.mxu0 0.0
        %1610 = vmatprep.subr.mxu0 0.0
        %1611 = vmatpush1.msra.mxu0 0.0
        %1612 = vmatprep.subr.mxu0 0.0
        %1613 = vmatpush1.msra.mxu0 0.0
        %1614 = vmatprep.subr.mxu0 0.0
        %1615 = vmatpush1.msra.mxu0 0.0
        %1616 = vmatprep.subr.mxu0 0.0
        %1617 = vmatpush1.msra.mxu0 0.0
        %1618 = vmatprep.subr.mxu0 0.0
        %1619 = vmatpush1.msra.mxu0 0.0
        %1620 = vmatprep.subr.mxu0 0.0
        %1621 = vmatpush1.msra.mxu0 0.0
        %1622 = vmatprep.subr.mxu0 0.0
        %1623 = vmatpush1.msra.mxu0 0.0
        %1624 = vmatprep.subr.mxu0 0.0
        %1625 = vmatpush1.msra.mxu0 0.0
        %1626 = vmatprep.subr.mxu0 0.0
        %1627 = vmatpush1.msra.mxu0 0.0
        %1628 = vmatprep.mubr.f32.mxu0 0.0
        %1629 = vmatmul.mubr.f32.gmra.mrb[0].mxu0 %v1562
        %v1630 = vpop.f32.mrb[0].mxu0
        %v1631 = vadd.f32 %v1560, %v1630
        %v1632 = vpop.f32.mrb[0].mxu0
        %1633 = vdwg.mxu0
        %v1634 = vld [vmem:[%s8] sm:$0xff]
        %v1635 = vld [vmem:[%s8 + $0x8] sm:$0xff]
        %v1636 = vld [vmem:[%s8 + $0x10] sm:$0xff]
        %v1637 = vld [vmem:[%s8 + $0x18] sm:$0xff]
        %v1638 = vld [vmem:[%s8 + $0x20] sm:$0xff]
        %v1639 = vld [vmem:[%s8 + $0x28] sm:$0xff]
        %v1640 = vld [vmem:[%s8 + $0x30] sm:$0x1]
        %v1642 = vsel %vm653, %v1640, 0
        %1644 = vmatprep.subr.mxu0 0.0
        %1645 = vmatpush1.msra.mxu0 %v1634
        %1646 = vmatprep.subr.mxu0 0.0
        %1647 = vmatpush1.msra.mxu0 %v1635
        %1648 = vmatprep.subr.mxu0 0.0
        %1649 = vmatpush1.msra.mxu0 %v1636
        %1650 = vmatprep.subr.mxu0 0.0
        %1651 = vmatpush1.msra.mxu0 %v1637
        %1652 = vmatprep.subr.mxu0 0.0
        %1653 = vmatpush1.msra.mxu0 %v1638
        %1654 = vmatprep.subr.mxu0 0.0
        %1655 = vmatpush1.msra.mxu0 %v1639
        %1656 = vmatprep.subr.mxu0 0.0
        %1657 = vmatpush1.msra.mxu0 %v1642
        %1658 = vmatprep.subr.mxu0 0.0
        %1659 = vmatpush1.msra.mxu0 0.0
        %1660 = vmatprep.subr.mxu0 0.0
        %1661 = vmatpush1.msra.mxu0 0.0
        %1662 = vmatprep.subr.mxu0 0.0
        %1663 = vmatpush1.msra.mxu0 0.0
        %1664 = vmatprep.subr.mxu0 0.0
        %1665 = vmatpush1.msra.mxu0 0.0
        %1666 = vmatprep.subr.mxu0 0.0
        %1667 = vmatpush1.msra.mxu0 0.0
        %1668 = vmatprep.subr.mxu0 0.0
        %1669 = vmatpush1.msra.mxu0 0.0
        %1670 = vmatprep.subr.mxu0 0.0
        %1671 = vmatpush1.msra.mxu0 0.0
        %1672 = vmatprep.subr.mxu0 0.0
        %1673 = vmatpush1.msra.mxu0 0.0
        %1674 = vmatprep.subr.mxu0 0.0
        %1675 = vmatpush1.msra.mxu0 0.0
        %1676 = vmatprep.subr.mxu0 0.0
        %1677 = vmatpush1.msra.mxu0 0.0
        %1678 = vmatprep.subr.mxu0 0.0
        %1679 = vmatpush1.msra.mxu0 0.0
        %1680 = vmatprep.subr.mxu0 0.0
        %1681 = vmatpush1.msra.mxu0 0.0
        %1682 = vmatprep.subr.mxu0 0.0
        %1683 = vmatpush1.msra.mxu0 0.0
        %1684 = vmatprep.subr.mxu0 0.0
        %1685 = vmatpush1.msra.mxu0 0.0
        %1686 = vmatprep.subr.mxu0 0.0
        %1687 = vmatpush1.msra.mxu0 0.0
        %1688 = vmatprep.subr.mxu0 0.0
        %1689 = vmatpush1.msra.mxu0 0.0
        %1690 = vmatprep.subr.mxu0 0.0
        %1691 = vmatpush1.msra.mxu0 0.0
        %1692 = vmatprep.subr.mxu0 0.0
        %1693 = vmatpush1.msra.mxu0 0.0
        %1694 = vmatprep.subr.mxu0 0.0
        %1695 = vmatpush1.msra.mxu0 0.0
        %1696 = vmatprep.subr.mxu0 0.0
        %1697 = vmatpush1.msra.mxu0 0.0
        %1698 = vmatprep.subr.mxu0 0.0
        %1699 = vmatpush1.msra.mxu0 0.0
        %1700 = vmatprep.subr.mxu0 0.0
        %1701 = vmatpush1.msra.mxu0 0.0
        %1702 = vmatprep.subr.mxu0 0.0
        %1703 = vmatpush1.msra.mxu0 0.0
        %1704 = vmatprep.subr.mxu0 0.0
        %1705 = vmatpush1.msra.mxu0 0.0
        %1706 = vmatprep.subr.mxu0 0.0
        %1707 = vmatpush1.msra.mxu0 0.0
        %1708 = vmatprep.mubr.f32.mxu0 0.0
        %1709 = vmatmul.mubr.f32.gmra.mrb[0].mxu0 %v762
        %v1710 = vpop.f32.mrb[0].mxu0
        %v1711 = vadd.f32 0.0, %v1710
        %v1712 = vpop.f32.mrb[0].mxu0
        %1713 = vmatprep.mubr.f32.mxu0 0.0
        %1714 = vmatmul.mubr.f32.gmra.mrb[0].mxu0 %v765
        %v1715 = vpop.f32.mrb[0].mxu0
        %v1716 = vadd.f32 0.0, %v1715
        %v1717 = vpop.f32.mrb[0].mxu0
        %1718 = vmatprep.mubr.f32.mxu0 0.0
        %1719 = vmatmul.mubr.f32.gmra.mrb[0].mxu0 %v768
        %v1720 = vpop.f32.mrb[0].mxu0
        %v1721 = vadd.f32 0.0, %v1720
        %v1722 = vpop.f32.mrb[0].mxu0
        %1723 = vmatprep.mubr.f32.mxu0 0.0
        %1724 = vmatmul.mubr.f32.gmra.mrb[0].mxu0 %v771
        %v1725 = vpop.f32.mrb[0].mxu0
        %v1726 = vadd.f32 0.0, %v1725
        %v1727 = vpop.f32.mrb[0].mxu0
        %1728 = vdwg.mxu0
        %1733 = vrot.lane.b32.xlu0 %v1711, 32
        %v1734 = vpop.permute.xlu0 %1733
        %1735 = vrot.lane.b32.xlu0 %v1716, 32
        %v1736 = vpop.permute.xlu0 %1735
        %1737 = vrot.lane.b32.xlu0 %v1721, 32
        %v1738 = vpop.permute.xlu0 %1737
        %1739 = vrot.lane.b32.xlu0 %v1726, 32
        %v1740 = vpop.permute.xlu0 %1739
        %v1745 = vmul.f32 %v1536, %v1734
        %v1746 = vmul.f32 %v1536, %v1736
        %v1747 = vmul.f32 %v1536, %v1738
        %v1748 = vmul.f32 %v1536, %v1740
        %1753 = vrot.lane.b32.xlu0 %v1745, 96
        %v1754 = vpop.permute.xlu0 %1753
        %1755 = vrot.lane.b32.xlu0 %v1746, 96
        %v1756 = vpop.permute.xlu0 %1755
        %1757 = vrot.lane.b32.xlu0 %v1747, 96
        %v1758 = vpop.permute.xlu0 %1757
        %1759 = vrot.lane.b32.xlu0 %v1748, 96
        %v1760 = vpop.permute.xlu0 %1759
        %v1765 = vsel %vm1392, %v1754, 0.0
        %1766 = vadd.xlane.f32.xlu0 %v1765
        %v1767 = vpop.xlane.xlu0 %1766
        %v1768 = vsel %vm1392, %v1756, 0.0
        %1769 = vadd.xlane.f32.xlu0 %v1768
        %v1770 = vpop.xlane.xlu0 %1769
        %v1771 = vsel %vm1392, %v1758, 0.0
        %1772 = vadd.xlane.f32.xlu0 %v1771
        %v1773 = vpop.xlane.xlu0 %1772
        %v1774 = vsel %vm1392, %v1760, 0.0
        %1775 = vadd.xlane.f32.xlu0 %v1774
        %v1776 = vpop.xlane.xlu0 %1775
        %v1777 = vadd.f32 %v1767, %v1711
        %v1778 = vadd.f32 %v1770, %v1716
        %v1779 = vadd.f32 %v1773, %v1721
        %v1780 = vadd.f32 %v1776, %v1726
        %v1781 = vlaneseq
        %v1782 = vand.u32 %v1781, 127
        %vm1783 = vcmp.eq.s32.totalorder %v1782, 6
        %1785 = vset.pattern.permute.xlu0 32
        %1786 = vperm.xlu0 %1785, %v1777
        %v1787 = vpop.permute.xlu0 %1786
        %v1789 = vsel %vm1783, %v1787, 0.0
        %v1790 = vadd.f32 %v1631, %v1789
        %vm1791 = vcmp.eq.s32.totalorder %v1782, 7
        %1793 = vset.pattern.permute.xlu0 32
        %1794 = vperm.xlu0 %1793, %v1778
        %v1795 = vpop.permute.xlu0 %1794
        %v1797 = vsel %vm1791, %v1795, 0.0
        %v1798 = vadd.f32 %v1790, %v1797
        %vm1799 = vcmp.eq.s32.totalorder %v1782, 8
        %1801 = vset.pattern.permute.xlu0 32
        %1802 = vperm.xlu0 %1801, %v1779
        %v1803 = vpop.permute.xlu0 %1802
        %v1805 = vsel %vm1799, %v1803, 0.0
        %v1806 = vadd.f32 %v1798, %v1805
        %vm1807 = vcmp.eq.s32.totalorder %v1782, 9
        %1809 = vset.pattern.permute.xlu0 32
        %1810 = vperm.xlu0 %1809, %v1780
        %v1811 = vpop.permute.xlu0 %1810
        %v1813 = vsel %vm1807, %v1811, 0.0
        %v1814 = vadd.f32 %v1806, %v1813
        %1815 = vst [vmem:[%s580] sm:$0xff] %v1814
        %s1816 = sand.u32 %s383, 1
        %s1817 = scalar_lea.sflag [#allocation3], %s1816
        %s1818 = sand.u32 %s383, 1
        %s1819 = smul.addr %s1818, 8
        %s1820 = scalar_lea.vmem [#allocation2], %s1819
        %s1821 = sand.u32 %s409, 1
        %s1822 = scalar_lea.sflag [#allocation5], %s1821
        %s1823 = sand.u32 %s409, 1
        %s1824 = smul.addr %s1823, 8
        %s1825 = scalar_lea.vmem [#allocation4], %s1824
        // Predicated region
        $region81: #{tpu_custom_call.1} parent=75 // pred_check
          %p1826 = pneg %p393
        $region82: #{tpu_custom_call.1} parent=75 // pred_check_branch
          %1828 = sbr.rel (%p1826) target = $region84
        $region83: #{tpu_custom_call.1} parent=75 // pred_region
          %s1829 = smul.u32 %s37, 8
          %s1830 = sadd.s32 %s1829, %s38
          %s1832 = ssub.s32 128, 128
          %1833 = vsyncadd %s1817, %s1832
          %s1834 = smul.addr %s1830, 128
          %s1835 = scalar_lea.hbm %s14, %s1834
          %s1837 = sshll.u32 %s1820, 4
          %s1838 = int_to_ptr.vmem [resolvable:$true] %s1837
          %1840 = dma.vmem_to_hbm [thread:$0]  %s1838, 128, %s1835, %s1817
        $region84: #{tpu_custom_call.1} parent=75 // pred_fallthru
          _
        // Predicated region
        $region85: #{tpu_custom_call.1} parent=75 // pred_check
          %p1841 = pneg %p419
        $region86: #{tpu_custom_call.1} parent=75 // pred_check_branch
          %1843 = sbr.rel (%p1841) target = $region88
        $region87: #{tpu_custom_call.1} parent=75 // pred_region
          %s1845 = ssub.s32 128, 128
          %1846 = vsyncadd %s1822, %s1845
          %s1847 = smul.addr %s37, 128
          %s1848 = scalar_lea.hbm %s15, %s1847
          %s1850 = sshll.u32 %s1825, 4
          %s1851 = int_to_ptr.vmem [resolvable:$true] %s1850
          %1853 = dma.vmem_to_hbm [thread:$0]  %s1851, 128, %s1848, %s1822
        $region88: #{tpu_custom_call.1} parent=75 // pred_fallthru
          _
      $region76: #{tpu_custom_call.1} parent=5 // pred_fallthru
        _
      %p1854 = scmp.le.s32.totalorder 2, %s28
      // Predicated region
      $region89: #{tpu_custom_call.1} parent=5 // pred_check
        %p1855 = pneg %p1854
      $region90: #{tpu_custom_call.1} parent=5 // pred_check_branch
        %1857 = sbr.rel (%p1855) target = $region92
      $region91: #{tpu_custom_call.1} parent=5 // pred_region
        %s1858 = ssub.s32 %s28, 2
        // Predicated region
        $region93: #{tpu_custom_call.1} parent=91 // pred_check
          %p1859 = pneg %p399
        $region94: #{tpu_custom_call.1} parent=91 // pred_check_branch
          %1861 = sbr.rel (%p1859) target = $region96
        $region95: #{tpu_custom_call.1} parent=91 // pred_region
          %s1862 = sand.u32 %s384, 1
          %s1863 = scalar_lea.sflag [#allocation3], %s1862
          %s1864 = sand.u32 %s384, 1
          %s1865 = smul.addr %s1864, 8
          %s1866 = scalar_lea.vmem [#allocation2], %s1865
          %1867 = dma.done %s1863, 128
        $region96: #{tpu_custom_call.1} parent=91 // pred_fallthru
          _
        // Predicated region
        $region97: #{tpu_custom_call.1} parent=91 // pred_check
          %p1868 = pneg %p425
        $region98: #{tpu_custom_call.1} parent=91 // pred_check_branch
          %1870 = sbr.rel (%p1868) target = $region100
        $region99: #{tpu_custom_call.1} parent=91 // pred_region
          %s1871 = sand.u32 %s410, 1
          %s1872 = scalar_lea.sflag [#allocation5], %s1871
          %s1873 = sand.u32 %s410, 1
          %s1874 = smul.addr %s1873, 8
          %s1875 = scalar_lea.vmem [#allocation4], %s1874
          %1876 = dma.done %s1872, 128
        $region100: #{tpu_custom_call.1} parent=91 // pred_fallthru
          _
      $region92: #{tpu_custom_call.1} parent=5 // pred_fallthru
        _
    $region6: #{tpu_custom_call.1} parent=1 // loop_footer
      %s32 = sadd.s32 1, %s28
    $region7: #{tpu_custom_call.1} parent=1 // loop_footer_branch
      %27 = sbr.rel target = $region3
    $region8: #{tpu_custom_call.1} parent=1 // loop_exit
      _
    %1877 = vsyncpa [#allocation3], 1
    %s1878 = scalar_lea.sflag [#allocation3], 1
    %1879 = vsyncpa %s1878, 1
    %1880 = vsyncpa [#allocation5], 1
    %s1881 = scalar_lea.sflag [#allocation5], 1
    %1882 = vsyncpa %s1881, 1

</llo_original>
